<compile_context>
chip_gen: v7x
topology: tpu7x:2x2x1
jax: 0.10.0
libtpu: 0.0.40
codegen_flags: <defaults>
</compile_context>

<pallas_src>
import jax
import jax.numpy as jnp
import numpy as np
from jax.experimental import pallas as pl
from jax.experimental.pallas import tpu as pltpu

EPS = 1e-5   # BatchNorm2d default eps
LANE = 128   # TPU lane width


def _round_up(x, m):
    return ((x + m - 1) // m) * m


def _conv3x3_bn_relu(pbuf, w_ref, a_ref, b_ref, H2, W2, padr):
    """One SAME 3x3 conv + folded BN + ReLU as a single im2col matmul.

    pbuf : (2*padr + H2*W2, Cp) VMEM scratch; rows [padr, padr+H2*W2) hold the
           input image flattened row-major (H2, W2, Cp) -> (H2*W2, Cp).
           The slack rows above/below are never used un-masked.
    w_ref: (9*Cp, Cout_p) im2col weight matrix (tap-major: kh, kw, cin).
    a_ref/b_ref: (1, Cout_p) folded BN scale / bias.
    returns (H2*W2, Cout_p) f32.
    """
    M = H2 * W2
    cp = pbuf.shape[1]

    # Row / column indices of every output pixel (full lane width -> simple
    # layouts for the selects).
    ri = jax.lax.broadcasted_iota(jnp.int32, (H2, W2, cp), 0).reshape(M, cp)
    ci = jax.lax.broadcasted_iota(jnp.int32, (H2, W2, cp), 1).reshape(M, cp)

    taps = []
    for kh in range(3):
        dh = kh - 1
        for kw in range(3):
            dw = kw - 1
            start = padr + dh * W2 + dw          # static, always in-bounds
            t = pbuf[start:start + M, :]         # contiguous (M, cp) slice
            cond = None
            if dh == -1:
                cond = ri >= 1
            elif dh == 1:
                cond = ri <= H2 - 2
            if dw == -1:
                c2 = ci >= 1
                cond = c2 if cond is None else (cond & c2)
            elif dw == 1:
                c2 = ci <= W2 - 2
                cond = c2 if cond is None else (cond & c2)
            if cond is not None:
                t = jnp.where(cond, t, 0.0)      # zero the SAME-pad border
            taps.append(t)

    patches = jnp.concatenate(taps, axis=1)                      # (M, 9*cp)
    acc = jnp.dot(patches, w_ref[...],
                  preferred_element_type=jnp.float32)            # (M, Cout_p)
    return jnp.maximum(acc * a_ref[...] + b_ref[...], 0.0)


def down_kernel(x_ref, w1_ref, a1_ref, b1_ref, w2_ref, a2_ref, b2_ref,
                o_ref, pbuf1, pbuf2):
    # x_ref : (1, H, W2, 2*Cp)   lanes = [even-col channels | odd-col channels]
    # w*_ref: (9*Cp, Cout_p)     im2col weight matrices
    # a/b   : (1, Cout_p)        folded BatchNorm scale / bias (conv bias incl.)
    # o_ref : (1, H2, W2, Cout_p)
    _, H2, W2, Cop = o_ref.shape
    H = x_ref.shape[1]
    Cp = x_ref.shape[3] // 2
    M = H2 * W2
    padr1 = (pbuf1.shape[0] - M) // 2
    padr2 = (pbuf2.shape[0] - M) // 2

    # ---- 2x2 max pool (all free reshapes + aligned-slice maximums) ---------
    x = x_ref[0]                                      # (H, W2, 2*Cp)
    xr = x.reshape(H2, 2 * W2, 2 * Cp)                # rows 2i | 2i+1 side by side
    hmax = jnp.maximum(xr[:, :W2, :], xr[:, W2:, :])          # H-direction
    pooled = jnp.maximum(hmax[:, :, :Cp], hmax[:, :, Cp:])    # W-direction
    # pooled: (H2, W2, Cp)

    # ---- conv1 + BN + ReLU (single im2col matmul) ---------------------------
    pbuf1[padr1:padr1 + M, :] = pooled.reshape(M, Cp)    # aligned, full-lane store
    h = _conv3x3_bn_relu(pbuf1, w1_ref, a1_ref, b1_ref, H2, W2, padr1)

    # ---- conv2 + BN + ReLU --------------------------------------------------
    pbuf2[padr2:padr2 + M, :] = h
    out = _conv3x3_bn_relu(pbuf2, w2_ref, a2_ref, b2_ref, H2, W2, padr2)

    o_ref[0] = out.reshape(H2, W2, Cop).astype(o_ref.dtype)


def down_forward(x_nchw, w1, a1, b1, w2, a2, b2):
    """x_nchw: (N, Cin, H, W); w*: (3,3,Cin/Cout,Cout) HWIO; a*/b*: (Cout,)."""
    N, Cin, H, W = x_nchw.shape
    H2, W2 = H // 2, W // 2
    Cout = w1.shape[-1]
    Cp = _round_up(Cin, LANE)
    Cop = _round_up(Cout, LANE)
    M = H2 * W2
    padr = _round_up(W2 + 1, 8)   # sublane-aligned halo for the flat row buffer

    # NCHW -> NHWC, pad channels to lane width, fold W-pairs onto the lane axis
    # (the final reshape is free: adjacent W columns are adjacent in memory).
    x = jnp.transpose(x_nchw, (0, 2, 3, 1)).astype(jnp.float32)
    if Cp > Cin:
        x = jnp.pad(x, ((0, 0), (0, 0), (0, 0), (0, Cp - Cin)))
    x = x.reshape(N, H, W2, 2 * Cp)

    def prep_w(w, cin_p, cout_p):
        kh, kw, ci, co = w.shape
        wp = jnp.zeros((kh, kw, cin_p, cout_p), jnp.float32)
        wp = wp.at[:, :, :ci, :co].set(w.astype(jnp.float32))
        return wp.reshape(kh * kw * cin_p, cout_p)       # tap-major (kh, kw, cin)

    def prep_v(v, cout_p):
        vp = jnp.zeros((1, cout_p), jnp.float32)
        return vp.at[0, :v.shape[0]].set(v.astype(jnp.float32))

    w1m = prep_w(w1, Cp, Cop)
    w2m = prep_w(w2, Cop, Cop)
    a1p, b1p = prep_v(a1, Cop), prep_v(b1, Cop)
    a2p, b2p = prep_v(a2, Cop), prep_v(b2, Cop)

    out_nhwc = pl.pallas_call(
        down_kernel,
        out_shape=jax.ShapeDtypeStruct((N, H2, W2, Cop), jnp.float32),
        grid=(N,),
        in_specs=[
            pl.BlockSpec((1, H, W2, 2 * Cp), lambda n: (n, 0, 0, 0)),
            pl.BlockSpec((9 * Cp, Cop), lambda n: (0, 0)),
            pl.BlockSpec((1, Cop), lambda n: (0, 0)),
            pl.BlockSpec((1, Cop), lambda n: (0, 0)),
            pl.BlockSpec((9 * Cop, Cop), lambda n: (0, 0)),
            pl.BlockSpec((1, Cop), lambda n: (0, 0)),
            pl.BlockSpec((1, Cop), lambda n: (0, 0)),
        ],
        out_specs=pl.BlockSpec((1, H2, W2, Cop), lambda n: (n, 0, 0, 0)),
        scratch_shapes=[
            pltpu.VMEM((2 * padr + M, Cp), jnp.float32),   # conv1 flat row buffer
            pltpu.VMEM((2 * padr + M, Cop), jnp.float32),  # conv2 flat row buffer
        ],
        compiler_params=pltpu.CompilerParams(
            dimension_semantics=("parallel",)),
    )(x, w1m, a1p, b1p, w2m, a2p, b2p)

    # slice padded channels away, back to NCHW
    return jnp.transpose(out_nhwc[..., :Cout], (0, 3, 1, 2))


def ref_forward(x_nchw, w1, cb1, g1, bt1, m1, v1, w2, cb2, g2, bt2, m2, v2):
    """Pure-JAX reference (eval-mode BatchNorm), NCHW in/out."""
    y = jnp.transpose(x_nchw, (0, 2, 3, 1))
    N, H, W, C = y.shape
    y = jnp.max(y.reshape(N, H // 2, 2, W // 2, 2, C), axis=(2, 4))

    def block(y, w, cb, g, bt, m, v):
        out = jax.lax.conv_general_dilated(
            y, w, (1, 1), "SAME",
            dimension_numbers=("NHWC", "HWIO", "NHWC")) + cb
        out = g * (out - m) / jnp.sqrt(v + EPS) + bt
        return jnp.maximum(out, 0.0)

    y = block(y, w1, cb1, g1, bt1, m1, v1)
    y = block(y, w2, cb2, g2, bt2, m2, v2)
    return jnp.transpose(y, (0, 3, 1, 2))


if __name__ == "__main__":
    key = jax.random.PRNGKey(0)
    ks = jax.random.split(key, 16)

    N, Cin, H, W = 2, 4, 16, 16
    Cout = 8

    x = jax.random.normal(ks[0], (N, Cin, H, W), jnp.float32)

    # conv1 + BN1 params (deterministic synthetic init)
    w1 = jax.random.normal(ks[1], (3, 3, Cin, Cout), jnp.float32) * 0.2
    cb1 = jax.random.normal(ks[2], (Cout,), jnp.float32) * 0.1
    g1 = 1.0 + 0.1 * jax.random.normal(ks[3], (Cout,), jnp.float32)
    bt1 = 0.1 * jax.random.normal(ks[4], (Cout,), jnp.float32)
    m1 = 0.1 * jax.random.normal(ks[5], (Cout,), jnp.float32)
    v1 = 1.0 + 0.1 * jax.nn.softplus(jax.random.normal(ks[6], (Cout,), jnp.float32))

    # conv2 + BN2 params
    w2 = jax.random.normal(ks[7], (3, 3, Cout, Cout), jnp.float32) * 0.2
    cb2 = jax.random.normal(ks[8], (Cout,), jnp.float32) * 0.1
    g2 = 1.0 + 0.1 * jax.random.normal(ks[9], (Cout,), jnp.float32)
    bt2 = 0.1 * jax.random.normal(ks[10], (Cout,), jnp.float32)
    m2 = 0.1 * jax.random.normal(ks[11], (Cout,), jnp.float32)
    v2 = 1.0 + 0.1 * jax.nn.softplus(jax.random.normal(ks[12], (Cout,), jnp.float32))

    # Fold conv bias + BatchNorm (eval mode) into a per-channel affine.
    a1 = g1 / jnp.sqrt(v1 + EPS)
    b1f = bt1 + a1 * (cb1 - m1)
    a2 = g2 / jnp.sqrt(v2 + EPS)
    b2f = bt2 + a2 * (cb2 - m2)

    out = down_forward(x, w1, a1, b1f, w2, a2, b2f)
    out = jax.block_until_ready(out)

    ref = ref_forward(x, w1, cb1, g1, bt1, m1, v1, w2, cb2, g2, bt2, m2, v2)
    ref = jax.block_until_ready(ref)

    assert out.shape == (N, Cout, H // 2, W // 2), out.shape
    np.testing.assert_allclose(np.asarray(out), np.asarray(ref),
                               rtol=1e-4, atol=1e-4)
    print("KERNEL_OK")
</pallas_src>

<mosaic_0001>
module attributes {stable_mosaic.version = 11 : i64} {
  func.func @down_kernel(%arg0: i32, %arg1: memref<1x16x8x256xf32, #tpu.memory_space<vmem>>, %arg2: memref<1152x128xf32, #tpu.memory_space<vmem>>, %arg3: memref<1x128xf32, #tpu.memory_space<vmem>>, %arg4: memref<1x128xf32, #tpu.memory_space<vmem>>, %arg5: memref<1152x128xf32, #tpu.memory_space<vmem>>, %arg6: memref<1x128xf32, #tpu.memory_space<vmem>>, %arg7: memref<1x128xf32, #tpu.memory_space<vmem>>, %arg8: memref<1x8x8x128xf32, #tpu.memory_space<vmem>>, %arg9: memref<96x128xf32, #tpu.memory_space<vmem>>, %arg10: memref<96x128xf32, #tpu.memory_space<vmem>>) attributes {dimension_semantics = [#tpu.dimension_semantics<parallel>], iteration_bounds = array<i64: 2>, scalar_prefetch = 0 : i64, scratch_operands = 2 : i64, tpu.core_type = #tpu.core_type<tc>, window_params = [{transform_indices = @transform_0, window_bounds = array<i64: 1, 16, 8, 256>}, {pipeline_mode = #tpu.pipeline_mode<synchronous>, transform_indices = @transform_1, window_bounds = array<i64: 1152, 128>}, {pipeline_mode = #tpu.pipeline_mode<synchronous>, transform_indices = @transform_2, window_bounds = array<i64: 1, 128>}, {pipeline_mode = #tpu.pipeline_mode<synchronous>, transform_indices = @transform_3, window_bounds = array<i64: 1, 128>}, {pipeline_mode = #tpu.pipeline_mode<synchronous>, transform_indices = @transform_4, window_bounds = array<i64: 1152, 128>}, {pipeline_mode = #tpu.pipeline_mode<synchronous>, transform_indices = @transform_5, window_bounds = array<i64: 1, 128>}, {pipeline_mode = #tpu.pipeline_mode<synchronous>, transform_indices = @transform_6, window_bounds = array<i64: 1, 128>}, {transform_indices = @transform_7, window_bounds = array<i64: 1, 8, 8, 128>}]} {
    %c0 = arith.constant 0 : index
    %c0_0 = arith.constant 0 : index
    %c0_1 = arith.constant 0 : index
    %c0_2 = arith.constant 0 : index
    %0 = vector.load %arg1[%c0, %c0_0, %c0_1, %c0_2] : memref<1x16x8x256xf32, #tpu.memory_space<vmem>>, vector<1x16x8x256xf32>
    %1 = vector.shape_cast %0 : vector<1x16x8x256xf32> to vector<16x8x256xf32>
    %2 = vector.shape_cast %1 : vector<16x8x256xf32> to vector<8x16x256xf32>
    %3 = vector.extract_strided_slice %2 {offsets = [0, 0, 0], sizes = [8, 8, 256], strides = [1, 1, 1]} : vector<8x16x256xf32> to vector<8x8x256xf32>
    %4 = vector.extract_strided_slice %2 {offsets = [0, 8, 0], sizes = [8, 8, 256], strides = [1, 1, 1]} : vector<8x16x256xf32> to vector<8x8x256xf32>
    %5 = arith.maximumf %3, %4 : vector<8x8x256xf32>
    %6 = vector.extract_strided_slice %5 {offsets = [0, 0, 0], sizes = [8, 8, 128], strides = [1, 1, 1]} : vector<8x8x256xf32> to vector<8x8x128xf32>
    %7 = vector.extract_strided_slice %5 {offsets = [0, 0, 128], sizes = [8, 8, 128], strides = [1, 1, 1]} : vector<8x8x256xf32> to vector<8x8x128xf32>
    %8 = arith.maximumf %6, %7 : vector<8x8x128xf32>
    %9 = vector.shape_cast %8 : vector<8x8x128xf32> to vector<64x128xf32>
    %c16 = arith.constant 16 : index
    %c0_3 = arith.constant 0 : index
    %10 = vector.load %arg9[%c16, %c0_3] : memref<96x128xf32, #tpu.memory_space<vmem>>, vector<64x128xf32>
    tpu.vector_store %arg9[%c16, %c0_3], %9 {strides = array<i32>} : memref<96x128xf32, #tpu.memory_space<vmem>>, vector<64x128xf32>,
    %11 = tpu.iota {dimensions = array<i32: 0>} : vector<8x8x128xi32>
    %12 = vector.shape_cast %11 : vector<8x8x128xi32> to vector<64x128xi32>
    %13 = tpu.iota {dimensions = array<i32: 1>} : vector<8x8x128xi32>
    %14 = vector.shape_cast %13 : vector<8x8x128xi32> to vector<64x128xi32>
    %c7 = arith.constant 7 : index
    %c0_4 = arith.constant 0 : index
    %15 = vector.load %arg9[%c7, %c0_4] : memref<96x128xf32, #tpu.memory_space<vmem>>, vector<64x128xf32>
    %c1_i32 = arith.constant 1 : i32
    %16 = vector.broadcast %c1_i32 : i32 to vector<64x128xi32>
    %17 = arith.cmpi sge, %12, %16 : vector<64x128xi32>
    %c1_i32_5 = arith.constant 1 : i32
    %18 = vector.broadcast %c1_i32_5 : i32 to vector<64x128xi32>
    %19 = arith.cmpi sge, %14, %18 : vector<64x128xi32>
    %20 = arith.andi %17, %19 : vector<64x128xi1>
    %cst = arith.constant 0.000000e+00 : f32
    %21 = vector.broadcast %cst : f32 to vector<64x128xf32>
    %22 = arith.select %20, %15, %21 : vector<64x128xi1>, vector<64x128xf32>
    %c8 = arith.constant 8 : index
    %c0_6 = arith.constant 0 : index
    %23 = vector.load %arg9[%c8, %c0_6] : memref<96x128xf32, #tpu.memory_space<vmem>>, vector<64x128xf32>
    %c1_i32_7 = arith.constant 1 : i32
    %24 = vector.broadcast %c1_i32_7 : i32 to vector<64x128xi32>
    %25 = arith.cmpi sge, %12, %24 : vector<64x128xi32>
    %cst_8 = arith.constant 0.000000e+00 : f32
    %26 = vector.broadcast %cst_8 : f32 to vector<64x128xf32>
    %27 = arith.select %25, %23, %26 : vector<64x128xi1>, vector<64x128xf32>
    %c9 = arith.constant 9 : index
    %c0_9 = arith.constant 0 : index
    %28 = vector.load %arg9[%c9, %c0_9] : memref<96x128xf32, #tpu.memory_space<vmem>>, vector<64x128xf32>
    %c1_i32_10 = arith.constant 1 : i32
    %29 = vector.broadcast %c1_i32_10 : i32 to vector<64x128xi32>
    %30 = arith.cmpi sge, %12, %29 : vector<64x128xi32>
    %c6_i32 = arith.constant 6 : i32
    %31 = vector.broadcast %c6_i32 : i32 to vector<64x128xi32>
    %32 = arith.cmpi sle, %14, %31 : vector<64x128xi32>
    %33 = arith.andi %30, %32 : vector<64x128xi1>
    %cst_11 = arith.constant 0.000000e+00 : f32
    %34 = vector.broadcast %cst_11 : f32 to vector<64x128xf32>
    %35 = arith.select %33, %28, %34 : vector<64x128xi1>, vector<64x128xf32>
    %c15 = arith.constant 15 : index
    %c0_12 = arith.constant 0 : index
    %36 = vector.load %arg9[%c15, %c0_12] : memref<96x128xf32, #tpu.memory_space<vmem>>, vector<64x128xf32>
    %c1_i32_13 = arith.constant 1 : i32
    %37 = vector.broadcast %c1_i32_13 : i32 to vector<64x128xi32>
    %38 = arith.cmpi sge, %14, %37 : vector<64x128xi32>
    %cst_14 = arith.constant 0.000000e+00 : f32
    %39 = vector.broadcast %cst_14 : f32 to vector<64x128xf32>
    %40 = arith.select %38, %36, %39 : vector<64x128xi1>, vector<64x128xf32>
    %c16_15 = arith.constant 16 : index
    %c0_16 = arith.constant 0 : index
    %41 = vector.load %arg9[%c16_15, %c0_16] : memref<96x128xf32, #tpu.memory_space<vmem>>, vector<64x128xf32>
    %c17 = arith.constant 17 : index
    %c0_17 = arith.constant 0 : index
    %42 = vector.load %arg9[%c17, %c0_17] : memref<96x128xf32, #tpu.memory_space<vmem>>, vector<64x128xf32>
    %c6_i32_18 = arith.constant 6 : i32
    %43 = vector.broadcast %c6_i32_18 : i32 to vector<64x128xi32>
    %44 = arith.cmpi sle, %14, %43 : vector<64x128xi32>
    %cst_19 = arith.constant 0.000000e+00 : f32
    %45 = vector.broadcast %cst_19 : f32 to vector<64x128xf32>
    %46 = arith.select %44, %42, %45 : vector<64x128xi1>, vector<64x128xf32>
    %c23 = arith.constant 23 : index
    %c0_20 = arith.constant 0 : index
    %47 = vector.load %arg9[%c23, %c0_20] : memref<96x128xf32, #tpu.memory_space<vmem>>, vector<64x128xf32>
    %c6_i32_21 = arith.constant 6 : i32
    %48 = vector.broadcast %c6_i32_21 : i32 to vector<64x128xi32>
    %49 = arith.cmpi sle, %12, %48 : vector<64x128xi32>
    %c1_i32_22 = arith.constant 1 : i32
    %50 = vector.broadcast %c1_i32_22 : i32 to vector<64x128xi32>
    %51 = arith.cmpi sge, %14, %50 : vector<64x128xi32>
    %52 = arith.andi %49, %51 : vector<64x128xi1>
    %cst_23 = arith.constant 0.000000e+00 : f32
    %53 = vector.broadcast %cst_23 : f32 to vector<64x128xf32>
    %54 = arith.select %52, %47, %53 : vector<64x128xi1>, vector<64x128xf32>
    %c24 = arith.constant 24 : index
    %c0_24 = arith.constant 0 : index
    %55 = vector.load %arg9[%c24, %c0_24] : memref<96x128xf32, #tpu.memory_space<vmem>>, vector<64x128xf32>
    %c6_i32_25 = arith.constant 6 : i32
    %56 = vector.broadcast %c6_i32_25 : i32 to vector<64x128xi32>
    %57 = arith.cmpi sle, %12, %56 : vector<64x128xi32>
    %cst_26 = arith.constant 0.000000e+00 : f32
    %58 = vector.broadcast %cst_26 : f32 to vector<64x128xf32>
    %59 = arith.select %57, %55, %58 : vector<64x128xi1>, vector<64x128xf32>
    %c25 = arith.constant 25 : index
    %c0_27 = arith.constant 0 : index
    %60 = vector.load %arg9[%c25, %c0_27] : memref<96x128xf32, #tpu.memory_space<vmem>>, vector<64x128xf32>
    %c6_i32_28 = arith.constant 6 : i32
    %61 = vector.broadcast %c6_i32_28 : i32 to vector<64x128xi32>
    %62 = arith.cmpi sle, %12, %61 : vector<64x128xi32>
    %c6_i32_29 = arith.constant 6 : i32
    %63 = vector.broadcast %c6_i32_29 : i32 to vector<64x128xi32>
    %64 = arith.cmpi sle, %14, %63 : vector<64x128xi32>
    %65 = arith.andi %62, %64 : vector<64x128xi1>
    %cst_30 = arith.constant 0.000000e+00 : f32
    %66 = vector.broadcast %cst_30 : f32 to vector<64x128xf32>
    %67 = arith.select %65, %60, %66 : vector<64x128xi1>, vector<64x128xf32>
    %68 = tpu.concatenate %22, %27, %35, %40, %41, %46, %54, %59, %67 in 1 : vector<64x128xf32>, vector<64x128xf32>, vector<64x128xf32>, vector<64x128xf32>, vector<64x128xf32>, vector<64x128xf32>, vector<64x128xf32>, vector<64x128xf32>, vector<64x128xf32> -> vector<64x1152xf32>
    %c0_31 = arith.constant 0 : index
    %c0_32 = arith.constant 0 : index
    %69 = vector.load %arg2[%c0_31, %c0_32] : memref<1152x128xf32, #tpu.memory_space<vmem>>, vector<1152x128xf32>
    %cst_33 = arith.constant dense<0.000000e+00> : vector<64x128xf32>
    %70 = tpu.matmul %68, %69, %cst_33 {dimension_numbers = #tpu.dot_dimension_numbers<[1], [0], [0], [1], [0, 0, 1, 1], [], []>} : vector<64x1152xf32>, vector<1152x128xf32>, vector<64x128xf32> -> vector<64x128xf32>
    %c0_34 = arith.constant 0 : index
    %c0_35 = arith.constant 0 : index
    %71 = vector.load %arg3[%c0_34, %c0_35] : memref<1x128xf32, #tpu.memory_space<vmem>>, vector<1x128xf32>
    %72 = vector.broadcast %71 : vector<1x128xf32> to vector<64x128xf32>
    %73 = arith.mulf %70, %72 : vector<64x128xf32>
    %c0_36 = arith.constant 0 : index
    %c0_37 = arith.constant 0 : index
    %74 = vector.load %arg4[%c0_36, %c0_37] : memref<1x128xf32, #tpu.memory_space<vmem>>, vector<1x128xf32>
    %75 = vector.broadcast %74 : vector<1x128xf32> to vector<64x128xf32>
    %76 = arith.addf %73, %75 : vector<64x128xf32>
    %cst_38 = arith.constant 0.000000e+00 : f32
    %77 = vector.broadcast %cst_38 : f32 to vector<64x128xf32>
    %78 = arith.maximumf %76, %77 : vector<64x128xf32>
    %c16_39 = arith.constant 16 : index
    %c0_40 = arith.constant 0 : index
    %79 = vector.load %arg10[%c16_39, %c0_40] : memref<96x128xf32, #tpu.memory_space<vmem>>, vector<64x128xf32>
    tpu.vector_store %arg10[%c16_39, %c0_40], %78 {strides = array<i32>} : memref<96x128xf32, #tpu.memory_space<vmem>>, vector<64x128xf32>,
    %80 = tpu.iota {dimensions = array<i32: 0>} : vector<8x8x128xi32>
    %81 = vector.shape_cast %80 : vector<8x8x128xi32> to vector<64x128xi32>
    %82 = tpu.iota {dimensions = array<i32: 1>} : vector<8x8x128xi32>
    %83 = vector.shape_cast %82 : vector<8x8x128xi32> to vector<64x128xi32>
    %c7_41 = arith.constant 7 : index
    %c0_42 = arith.constant 0 : index
    %84 = vector.load %arg10[%c7_41, %c0_42] : memref<96x128xf32, #tpu.memory_space<vmem>>, vector<64x128xf32>
    %c1_i32_43 = arith.constant 1 : i32
    %85 = vector.broadcast %c1_i32_43 : i32 to vector<64x128xi32>
    %86 = arith.cmpi sge, %81, %85 : vector<64x128xi32>
    %c1_i32_44 = arith.constant 1 : i32
    %87 = vector.broadcast %c1_i32_44 : i32 to vector<64x128xi32>
    %88 = arith.cmpi sge, %83, %87 : vector<64x128xi32>
    %89 = arith.andi %86, %88 : vector<64x128xi1>
    %cst_45 = arith.constant 0.000000e+00 : f32
    %90 = vector.broadcast %cst_45 : f32 to vector<64x128xf32>
    %91 = arith.select %89, %84, %90 : vector<64x128xi1>, vector<64x128xf32>
    %c8_46 = arith.constant 8 : index
    %c0_47 = arith.constant 0 : index
    %92 = vector.load %arg10[%c8_46, %c0_47] : memref<96x128xf32, #tpu.memory_space<vmem>>, vector<64x128xf32>
    %c1_i32_48 = arith.constant 1 : i32
    %93 = vector.broadcast %c1_i32_48 : i32 to vector<64x128xi32>
    %94 = arith.cmpi sge, %81, %93 : vector<64x128xi32>
    %cst_49 = arith.constant 0.000000e+00 : f32
    %95 = vector.broadcast %cst_49 : f32 to vector<64x128xf32>
    %96 = arith.select %94, %92, %95 : vector<64x128xi1>, vector<64x128xf32>
    %c9_50 = arith.constant 9 : index
    %c0_51 = arith.constant 0 : index
    %97 = vector.load %arg10[%c9_50, %c0_51] : memref<96x128xf32, #tpu.memory_space<vmem>>, vector<64x128xf32>
    %c1_i32_52 = arith.constant 1 : i32
    %98 = vector.broadcast %c1_i32_52 : i32 to vector<64x128xi32>
    %99 = arith.cmpi sge, %81, %98 : vector<64x128xi32>
    %c6_i32_53 = arith.constant 6 : i32
    %100 = vector.broadcast %c6_i32_53 : i32 to vector<64x128xi32>
    %101 = arith.cmpi sle, %83, %100 : vector<64x128xi32>
    %102 = arith.andi %99, %101 : vector<64x128xi1>
    %cst_54 = arith.constant 0.000000e+00 : f32
    %103 = vector.broadcast %cst_54 : f32 to vector<64x128xf32>
    %104 = arith.select %102, %97, %103 : vector<64x128xi1>, vector<64x128xf32>
    %c15_55 = arith.constant 15 : index
    %c0_56 = arith.constant 0 : index
    %105 = vector.load %arg10[%c15_55, %c0_56] : memref<96x128xf32, #tpu.memory_space<vmem>>, vector<64x128xf32>
    %c1_i32_57 = arith.constant 1 : i32
    %106 = vector.broadcast %c1_i32_57 : i32 to vector<64x128xi32>
    %107 = arith.cmpi sge, %83, %106 : vector<64x128xi32>
    %cst_58 = arith.constant 0.000000e+00 : f32
    %108 = vector.broadcast %cst_58 : f32 to vector<64x128xf32>
    %109 = arith.select %107, %105, %108 : vector<64x128xi1>, vector<64x128xf32>
    %c16_59 = arith.constant 16 : index
    %c0_60 = arith.constant 0 : index
    %110 = vector.load %arg10[%c16_59, %c0_60] : memref<96x128xf32, #tpu.memory_space<vmem>>, vector<64x128xf32>
    %c17_61 = arith.constant 17 : index
    %c0_62 = arith.constant 0 : index
    %111 = vector.load %arg10[%c17_61, %c0_62] : memref<96x128xf32, #tpu.memory_space<vmem>>, vector<64x128xf32>
    %c6_i32_63 = arith.constant 6 : i32
    %112 = vector.broadcast %c6_i32_63 : i32 to vector<64x128xi32>
    %113 = arith.cmpi sle, %83, %112 : vector<64x128xi32>
    %cst_64 = arith.constant 0.000000e+00 : f32
    %114 = vector.broadcast %cst_64 : f32 to vector<64x128xf32>
    %115 = arith.select %113, %111, %114 : vector<64x128xi1>, vector<64x128xf32>
    %c23_65 = arith.constant 23 : index
    %c0_66 = arith.constant 0 : index
    %116 = vector.load %arg10[%c23_65, %c0_66] : memref<96x128xf32, #tpu.memory_space<vmem>>, vector<64x128xf32>
    %c6_i32_67 = arith.constant 6 : i32
    %117 = vector.broadcast %c6_i32_67 : i32 to vector<64x128xi32>
    %118 = arith.cmpi sle, %81, %117 : vector<64x128xi32>
    %c1_i32_68 = arith.constant 1 : i32
    %119 = vector.broadcast %c1_i32_68 : i32 to vector<64x128xi32>
    %120 = arith.cmpi sge, %83, %119 : vector<64x128xi32>
    %121 = arith.andi %118, %120 : vector<64x128xi1>
    %cst_69 = arith.constant 0.000000e+00 : f32
    %122 = vector.broadcast %cst_69 : f32 to vector<64x128xf32>
    %123 = arith.select %121, %116, %122 : vector<64x128xi1>, vector<64x128xf32>
    %c24_70 = arith.constant 24 : index
    %c0_71 = arith.constant 0 : index
    %124 = vector.load %arg10[%c24_70, %c0_71] : memref<96x128xf32, #tpu.memory_space<vmem>>, vector<64x128xf32>
    %c6_i32_72 = arith.constant 6 : i32
    %125 = vector.broadcast %c6_i32_72 : i32 to vector<64x128xi32>
    %126 = arith.cmpi sle, %81, %125 : vector<64x128xi32>
    %cst_73 = arith.constant 0.000000e+00 : f32
    %127 = vector.broadcast %cst_73 : f32 to vector<64x128xf32>
    %128 = arith.select %126, %124, %127 : vector<64x128xi1>, vector<64x128xf32>
    %c25_74 = arith.constant 25 : index
    %c0_75 = arith.constant 0 : index
    %129 = vector.load %arg10[%c25_74, %c0_75] : memref<96x128xf32, #tpu.memory_space<vmem>>, vector<64x128xf32>
    %c6_i32_76 = arith.constant 6 : i32
    %130 = vector.broadcast %c6_i32_76 : i32 to vector<64x128xi32>
    %131 = arith.cmpi sle, %81, %130 : vector<64x128xi32>
    %c6_i32_77 = arith.constant 6 : i32
    %132 = vector.broadcast %c6_i32_77 : i32 to vector<64x128xi32>
    %133 = arith.cmpi sle, %83, %132 : vector<64x128xi32>
    %134 = arith.andi %131, %133 : vector<64x128xi1>
    %cst_78 = arith.constant 0.000000e+00 : f32
    %135 = vector.broadcast %cst_78 : f32 to vector<64x128xf32>
    %136 = arith.select %134, %129, %135 : vector<64x128xi1>, vector<64x128xf32>
    %137 = tpu.concatenate %91, %96, %104, %109, %110, %115, %123, %128, %136 in 1 : vector<64x128xf32>, vector<64x128xf32>, vector<64x128xf32>, vector<64x128xf32>, vector<64x128xf32>, vector<64x128xf32>, vector<64x128xf32>, vector<64x128xf32>, vector<64x128xf32> -> vector<64x1152xf32>
    %c0_79 = arith.constant 0 : index
    %c0_80 = arith.constant 0 : index
    %138 = vector.load %arg5[%c0_79, %c0_80] : memref<1152x128xf32, #tpu.memory_space<vmem>>, vector<1152x128xf32>
    %cst_81 = arith.constant dense<0.000000e+00> : vector<64x128xf32>
    %139 = tpu.matmul %137, %138, %cst_81 {dimension_numbers = #tpu.dot_dimension_numbers<[1], [0], [0], [1], [0, 0, 1, 1], [], []>} : vector<64x1152xf32>, vector<1152x128xf32>, vector<64x128xf32> -> vector<64x128xf32>
    %c0_82 = arith.constant 0 : index
    %c0_83 = arith.constant 0 : index
    %140 = vector.load %arg6[%c0_82, %c0_83] : memref<1x128xf32, #tpu.memory_space<vmem>>, vector<1x128xf32>
    %141 = vector.broadcast %140 : vector<1x128xf32> to vector<64x128xf32>
    %142 = arith.mulf %139, %141 : vector<64x128xf32>
    %c0_84 = arith.constant 0 : index
    %c0_85 = arith.constant 0 : index
    %143 = vector.load %arg7[%c0_84, %c0_85] : memref<1x128xf32, #tpu.memory_space<vmem>>, vector<1x128xf32>
    %144 = vector.broadcast %143 : vector<1x128xf32> to vector<64x128xf32>
    %145 = arith.addf %142, %144 : vector<64x128xf32>
    %cst_86 = arith.constant 0.000000e+00 : f32
    %146 = vector.broadcast %cst_86 : f32 to vector<64x128xf32>
    %147 = arith.maximumf %145, %146 : vector<64x128xf32>
    %148 = vector.shape_cast %147 : vector<64x128xf32> to vector<8x8x128xf32>
    %c0_87 = arith.constant 0 : index
    %c0_88 = arith.constant 0 : index
    %c0_89 = arith.constant 0 : index
    %c0_90 = arith.constant 0 : index
    %149 = vector.load %arg8[%c0_87, %c0_88, %c0_89, %c0_90] : memref<1x8x8x128xf32, #tpu.memory_space<vmem>>, vector<1x8x8x128xf32>
    %150 = vector.shape_cast %149 : vector<1x8x8x128xf32> to vector<8x8x128xf32>
    %151 = vector.shape_cast %148 : vector<8x8x128xf32> to vector<1x8x8x128xf32>
    tpu.vector_store %arg8[%c0_87, %c0_88, %c0_89, %c0_90], %151 {strides = array<i32>} : memref<1x8x8x128xf32, #tpu.memory_space<vmem>>, vector<1x8x8x128xf32>,
    return
  }
  func.func @transform_0(%arg0: i32) -> (i32, i32, i32, i32) {
    %c0_i32 = arith.constant 0 : i32
    %c0_i32_0 = arith.constant 0 : i32
    %c0_i32_1 = arith.constant 0 : i32
    %c0_i32_2 = arith.constant 0 : i32
    return %arg0, %c0_i32, %c0_i32_0, %c0_i32_1 : i32, i32, i32, i32
  }
  func.func @transform_1(%arg0: i32) -> (i32, i32) {
    %c0_i32 = arith.constant 0 : i32
    %c0_i32_0 = arith.constant 0 : i32
    %c0_i32_1 = arith.constant 0 : i32
    return %c0_i32, %c0_i32_0 : i32, i32
  }
  func.func @transform_2(%arg0: i32) -> (i32, i32) {
    %c0_i32 = arith.constant 0 : i32
    %c0_i32_0 = arith.constant 0 : i32
    %c0_i32_1 = arith.constant 0 : i32
    return %c0_i32, %c0_i32_0 : i32, i32
  }
  func.func @transform_3(%arg0: i32) -> (i32, i32) {
    %c0_i32 = arith.constant 0 : i32
    %c0_i32_0 = arith.constant 0 : i32
    %c0_i32_1 = arith.constant 0 : i32
    return %c0_i32, %c0_i32_0 : i32, i32
  }
  func.func @transform_4(%arg0: i32) -> (i32, i32) {
    %c0_i32 = arith.constant 0 : i32
    %c0_i32_0 = arith.constant 0 : i32
    %c0_i32_1 = arith.constant 0 : i32
    return %c0_i32, %c0_i32_0 : i32, i32
  }
  func.func @transform_5(%arg0: i32) -> (i32, i32) {
    %c0_i32 = arith.constant 0 : i32
    %c0_i32_0 = arith.constant 0 : i32
    %c0_i32_1 = arith.constant 0 : i32
    return %c0_i32, %c0_i32_0 : i32, i32
  }
  func.func @transform_6(%arg0: i32) -> (i32, i32) {
    %c0_i32 = arith.constant 0 : i32
    %c0_i32_0 = arith.constant 0 : i32
    %c0_i32_1 = arith.constant 0 : i32
    return %c0_i32, %c0_i32_0 : i32, i32
  }
  func.func @transform_7(%arg0: i32) -> (i32, i32, i32, i32) {
    %c0_i32 = arith.constant 0 : i32
    %c0_i32_0 = arith.constant 0 : i32
    %c0_i32_1 = arith.constant 0 : i32
    %c0_i32_2 = arith.constant 0 : i32
    return %arg0, %c0_i32, %c0_i32_0, %c0_i32_1 : i32, i32, i32, i32
  }
}

</mosaic_0001>

<llo_original>
// kernel: tpu_custom_call.1
$region0: #{tpu_custom_call.1}
  #allocation0 [shape = 'u32[]', space=smem, size = 0x4, offset = 0x4, fixed_abs, tag = 'smem constant byte address 0x4 - core index']
  #allocation1 [shape = 'u32[144,128]{1,0:T(1,128)}', space=vmem, size = 0x12000, scoped, tag = 'internal scratch']
  #allocation2 [shape = 'f32[96,128]{1,0:T(8,128)}', space=vmem, size = 0xc000, scoped, tag = 'scratch operand']
  #allocation3 [shape = 'f32[96,128]{1,0:T(8,128)}', space=vmem, size = 0xc000, scoped, tag = 'scratch operand']
  %s0 = inlined_call_operand.hbm [shape: f32[2,16,8,256], index: 0, kind: input, shape index: {}]
  %s1 = inlined_call_operand.hbm [shape: f32[1152,128], index: 1, kind: input, shape index: {}]
  %s2 = inlined_call_operand.vmem [shape: f32[1,128], index: 2, kind: input, shape index: {}]
  %s3 = inlined_call_operand.vmem [shape: f32[1,128], index: 3, kind: input, shape index: {}]
  %s4 = inlined_call_operand.hbm [shape: f32[1152,128], index: 4, kind: input, shape index: {}]
  %s5 = inlined_call_operand.vmem [shape: f32[1,128], index: 5, kind: input, shape index: {}]
  %s6 = inlined_call_operand.vmem [shape: f32[1,128], index: 6, kind: input, shape index: {}]
  %s7 = inlined_call_operand.hbm [shape: f32[2,8,8,128], index: 7, kind: output, shape index: {}]
  %s8 = sld [smem:[#allocation0]]
  $region73: #{tpu_custom_call.1} parent=0
    _
  %s10 = ssub.s32 1, %s8
  %s11 = scalar_select 0, %s10, %s8
  $region1: #{tpu_custom_call.1} parent=0
    #allocation4 [shape = 'u8[262144]{0}', space=vmem, size = 0x40000, scoped, tag = 'input window, operand 0']
    #allocation5 [shape = 's32[2]{0}', space=sflag, size = 0x8, scoped, tag = 'scoped memory for tpu_custom_call.1']
    #allocation6 [shape = 's32[2]{0}', space=sflag, size = 0x8, scoped, tag = 'scoped memory for tpu_custom_call.1']
    #allocation7 [shape = 'u8[589824]{0}', space=vmem, size = 0x90000, scoped, tag = 'input window, operand 1, single buffered']
    #allocation8 [shape = 's32[1]{0}', space=sflag, size = 0x4, scoped, tag = 'scoped memory for tpu_custom_call.1']
    #allocation9 [shape = 'u8[589824]{0}', space=vmem, size = 0x90000, scoped, tag = 'input window, operand 4, single buffered']
    #allocation10 [shape = 'u8[65536]{0}', space=vmem, size = 0x10000, scoped, tag = 'output window, operand 0']
    %12 = vsyncpa [#allocation5], 0
    %s13 = scalar_lea.sflag [#allocation5], 1
    %14 = vsyncpa %s13, 0
    %15 = vsyncpa [#allocation8], 0
    %16 = vsyncpa [#allocation6], 0
    %s17 = scalar_lea.sflag [#allocation6], 1
    %18 = vsyncpa %s17, 0
    loop: start=0, step=1, limit=4
    $region2: #{tpu_custom_call.1} parent=1 // loop_pre_header
      _
    $region3: #{tpu_custom_call.1} parent=1 // loop_header
      %s20 = sphi 0, %s24
      %p21 = scmp.ge.s32.totalorder %s20, 4
      %s30 = sphi 0, %s32
      %s33 = sphi 0, %s30
      %s34 = sphi 0, %s33
      %s50 = sphi 0, %s34
      %s54 = sphi 0, %s54
      %s56 = sphi 0, %s54
      %s57 = sphi 0, %s56
      %s71 = sphi 0, %s57
      %s75 = sphi 0, %s75
      %s77 = sphi 0, %s75
      %s78 = sphi 0, %s77
      %s92 = sphi 0, %s78
      %s96 = sphi 0, %s96
      %s98 = sphi 0, %s96
      %s99 = sphi 0, %s98
      %s113 = sphi 0, %s99
      %s117 = sphi 0, %s117
      %s119 = sphi 0, %s117
      %s120 = sphi 0, %s119
      %s134 = sphi 0, %s120
      %s138 = sphi 0, %s138
      %s140 = sphi 0, %s138
      %s141 = sphi 0, %s140
      %s155 = sphi 0, %s141
      %s159 = sphi 0, %s159
      %s161 = sphi 0, %s159
      %s162 = sphi 0, %s161
      %s176 = sphi 0, %s162
      %s182 = sphi 0, %s184
      %s185 = sphi 0, %s182
      %s186 = sphi 0, %s185
      %s202 = sphi 0, %s186
    $region4: #{tpu_custom_call.1} parent=1 // loop_header_branch
      %23 = sbr.rel (%p21) target = $region8
    $region5: #{tpu_custom_call.1} parent=1 // loop_body
      %s25 = ssub.s32 %s20, 1
      %s26 = ssub.s32 %s20, 2
      %s27 = sadd.s32 %s20, 1
      %s28 = ssub.s32 %s20, %s27
      %p29 = scmp.eq.s32.totalorder %s28, 0
      %s31 = sadd.s32 %s30, 1
      %s32 = scalar_select %p29, %s30, %s31
      %p35 = pneg %p29
      %p36 = scmp.eq.s32.totalorder %s20, 1
      %p37 = por %p35, %p36
      %p38 = scmp.ne.s32.totalorder %s30, %s33
      %p39 = scmp.eq.s32.totalorder %s20, 0
      %p40 = por %p38, %p39
      %p41 = scmp.ne.s32.totalorder %s30, %s33
      %p42 = scmp.eq.s32.totalorder %s25, 1
      %p43 = por %p41, %p42
      %p44 = scmp.ne.s32.totalorder %s33, %s34
      %p45 = scmp.eq.s32.totalorder %s25, 0
      %p46 = por %p44, %p45
      %p47 = scmp.ne.s32.totalorder %s33, %s34
      %p48 = scmp.eq.s32.totalorder %s26, 1
      %p49 = por %p47, %p48
      %p51 = scmp.ne.s32.totalorder %s34, %s50
      %p52 = scmp.eq.s32.totalorder %s26, 0
      %p53 = por %p51, %p52
      %s55 = sadd.s32 %s54, 1
      %p58 = scmp.eq.s32.totalorder %s20, 1
      %p59 = scmp.ne.s32.totalorder %s54, %s56
      %p60 = scmp.eq.s32.totalorder %s20, 0
      %p61 = por %p59, %p60
      %p62 = scmp.ne.s32.totalorder %s54, %s56
      %p63 = scmp.eq.s32.totalorder %s25, 1
      %p64 = por %p62, %p63
      %p65 = scmp.ne.s32.totalorder %s56, %s57
      %p66 = scmp.eq.s32.totalorder %s25, 0
      %p67 = por %p65, %p66
      %p68 = scmp.ne.s32.totalorder %s56, %s57
      %p69 = scmp.eq.s32.totalorder %s26, 1
      %p70 = por %p68, %p69
      %p72 = scmp.ne.s32.totalorder %s57, %s71
      %p73 = scmp.eq.s32.totalorder %s26, 0
      %p74 = por %p72, %p73
      %s76 = sadd.s32 %s75, 1
      %p79 = scmp.eq.s32.totalorder %s20, 1
      %p80 = scmp.ne.s32.totalorder %s75, %s77
      %p81 = scmp.eq.s32.totalorder %s20, 0
      %p82 = por %p80, %p81
      %p83 = scmp.ne.s32.totalorder %s75, %s77
      %p84 = scmp.eq.s32.totalorder %s25, 1
      %p85 = por %p83, %p84
      %p86 = scmp.ne.s32.totalorder %s77, %s78
      %p87 = scmp.eq.s32.totalorder %s25, 0
      %p88 = por %p86, %p87
      %p89 = scmp.ne.s32.totalorder %s77, %s78
      %p90 = scmp.eq.s32.totalorder %s26, 1
      %p91 = por %p89, %p90
      %p93 = scmp.ne.s32.totalorder %s78, %s92
      %p94 = scmp.eq.s32.totalorder %s26, 0
      %p95 = por %p93, %p94
      %s97 = sadd.s32 %s96, 1
      %p100 = scmp.eq.s32.totalorder %s20, 1
      %p101 = scmp.ne.s32.totalorder %s96, %s98
      %p102 = scmp.eq.s32.totalorder %s20, 0
      %p103 = por %p101, %p102
      %p104 = scmp.ne.s32.totalorder %s96, %s98
      %p105 = scmp.eq.s32.totalorder %s25, 1
      %p106 = por %p104, %p105
      %p107 = scmp.ne.s32.totalorder %s98, %s99
      %p108 = scmp.eq.s32.totalorder %s25, 0
      %p109 = por %p107, %p108
      %p110 = scmp.ne.s32.totalorder %s98, %s99
      %p111 = scmp.eq.s32.totalorder %s26, 1
      %p112 = por %p110, %p111
      %p114 = scmp.ne.s32.totalorder %s99, %s113
      %p115 = scmp.eq.s32.totalorder %s26, 0
      %p116 = por %p114, %p115
      %s118 = sadd.s32 %s117, 1
      %p121 = scmp.eq.s32.totalorder %s20, 1
      %p122 = scmp.ne.s32.totalorder %s117, %s119
      %p123 = scmp.eq.s32.totalorder %s20, 0
      %p124 = por %p122, %p123
      %p125 = scmp.ne.s32.totalorder %s117, %s119
      %p126 = scmp.eq.s32.totalorder %s25, 1
      %p127 = por %p125, %p126
      %p128 = scmp.ne.s32.totalorder %s119, %s120
      %p129 = scmp.eq.s32.totalorder %s25, 0
      %p130 = por %p128, %p129
      %p131 = scmp.ne.s32.totalorder %s119, %s120
      %p132 = scmp.eq.s32.totalorder %s26, 1
      %p133 = por %p131, %p132
      %p135 = scmp.ne.s32.totalorder %s120, %s134
      %p136 = scmp.eq.s32.totalorder %s26, 0
      %p137 = por %p135, %p136
      %s139 = sadd.s32 %s138, 1
      %p142 = scmp.eq.s32.totalorder %s20, 1
      %p143 = scmp.ne.s32.totalorder %s138, %s140
      %p144 = scmp.eq.s32.totalorder %s20, 0
      %p145 = por %p143, %p144
      %p146 = scmp.ne.s32.totalorder %s138, %s140
      %p147 = scmp.eq.s32.totalorder %s25, 1
      %p148 = por %p146, %p147
      %p149 = scmp.ne.s32.totalorder %s140, %s141
      %p150 = scmp.eq.s32.totalorder %s25, 0
      %p151 = por %p149, %p150
      %p152 = scmp.ne.s32.totalorder %s140, %s141
      %p153 = scmp.eq.s32.totalorder %s26, 1
      %p154 = por %p152, %p153
      %p156 = scmp.ne.s32.totalorder %s141, %s155
      %p157 = scmp.eq.s32.totalorder %s26, 0
      %p158 = por %p156, %p157
      %s160 = sadd.s32 %s159, 1
      %p163 = scmp.eq.s32.totalorder %s20, 1
      %p164 = scmp.ne.s32.totalorder %s159, %s161
      %p165 = scmp.eq.s32.totalorder %s20, 0
      %p166 = por %p164, %p165
      %p167 = scmp.ne.s32.totalorder %s159, %s161
      %p168 = scmp.eq.s32.totalorder %s25, 1
      %p169 = por %p167, %p168
      %p170 = scmp.ne.s32.totalorder %s161, %s162
      %p171 = scmp.eq.s32.totalorder %s25, 0
      %p172 = por %p170, %p171
      %p173 = scmp.ne.s32.totalorder %s161, %s162
      %p174 = scmp.eq.s32.totalorder %s26, 1
      %p175 = por %p173, %p174
      %p177 = scmp.ne.s32.totalorder %s162, %s176
      %p178 = scmp.eq.s32.totalorder %s26, 0
      %p179 = por %p177, %p178
      %s180 = ssub.s32 %s20, %s27
      %p181 = scmp.eq.s32.totalorder %s180, 0
      %s183 = sadd.s32 %s182, 1
      %s184 = scalar_select %p181, %s182, %s183
      %p187 = pneg %p181
      %p188 = scmp.eq.s32.totalorder %s20, 1
      %p189 = por %p187, %p188
      %p190 = scmp.ne.s32.totalorder %s182, %s185
      %p191 = scmp.eq.s32.totalorder %s20, 0
      %p192 = por %p190, %p191
      %p193 = scmp.ne.s32.totalorder %s182, %s185
      %p194 = scmp.eq.s32.totalorder %s25, 1
      %p195 = por %p193, %p194
      %p196 = scmp.ne.s32.totalorder %s185, %s186
      %p197 = scmp.eq.s32.totalorder %s25, 0
      %p198 = por %p196, %p197
      %p199 = scmp.ne.s32.totalorder %s185, %s186
      %p200 = scmp.eq.s32.totalorder %s26, 1
      %p201 = por %p199, %p200
      %p203 = scmp.ne.s32.totalorder %s186, %s202
      %p204 = scmp.eq.s32.totalorder %s26, 0
      %p205 = por %p203, %p204
      %p206 = scmp.le.s32.totalorder 1, %s20
      %p207 = scmp.lt.s32.totalorder %s20, 3
      %p208 = pnand %p206, %p207
      %p209 = pneg %p208
      // Predicated region
      $region9: #{tpu_custom_call.1} parent=5 // pred_check
        _
      $region10: #{tpu_custom_call.1} parent=5 // pred_check_branch
        %211 = sbr.rel (%p208) target = $region12
      $region11: #{tpu_custom_call.1} parent=5 // pred_region
        %s212 = ssub.s32 %s20, 1
        // Predicated region
        $region13: #{tpu_custom_call.1} parent=11 // pred_check
          %p213 = pneg %p67
        $region14: #{tpu_custom_call.1} parent=11 // pred_check_branch
          %215 = sbr.rel (%p213) target = $region16
        $region15: #{tpu_custom_call.1} parent=11 // pred_region
          %s217 = ssub.s32 18432, 18432
          %218 = vsyncadd [#allocation8], %s217
          %s219 = sshll.u32 [#allocation7], 4
          %s220 = int_to_ptr.vmem [resolvable:$true] %s219
          %225 = dma.hbm_to_vmem [thread:$0]  %s1, 18432, %s220, [#allocation8], 128, 128, 8
        $region16: #{tpu_custom_call.1} parent=11 // pred_fallthru
          _
        // Predicated region
        $region17: #{tpu_custom_call.1} parent=11 // pred_check
          %p226 = pneg %p88
        $region18: #{tpu_custom_call.1} parent=11 // pred_check_branch
          %228 = sbr.rel (%p226) target = $region20
        $region19: #{tpu_custom_call.1} parent=11 // pred_region
          _
        $region20: #{tpu_custom_call.1} parent=11 // pred_fallthru
          _
        // Predicated region
        $region21: #{tpu_custom_call.1} parent=11 // pred_check
          %p229 = pneg %p109
        $region22: #{tpu_custom_call.1} parent=11 // pred_check_branch
          %231 = sbr.rel (%p229) target = $region24
        $region23: #{tpu_custom_call.1} parent=11 // pred_region
          _
        $region24: #{tpu_custom_call.1} parent=11 // pred_fallthru
          _
        // Predicated region
        $region25: #{tpu_custom_call.1} parent=11 // pred_check
          %p232 = pneg %p130
        $region26: #{tpu_custom_call.1} parent=11 // pred_check_branch
          %234 = sbr.rel (%p232) target = $region28
        $region27: #{tpu_custom_call.1} parent=11 // pred_region
          %s236 = ssub.s32 18432, 18432
          %237 = vsyncadd [#allocation8], %s236
          %s238 = sshll.u32 [#allocation9], 4
          %s239 = int_to_ptr.vmem [resolvable:$true] %s238
          %244 = dma.hbm_to_vmem [thread:$0]  %s4, 18432, %s239, [#allocation8], 128, 128, 8
        $region28: #{tpu_custom_call.1} parent=11 // pred_fallthru
          _
        // Predicated region
        $region29: #{tpu_custom_call.1} parent=11 // pred_check
          %p245 = pneg %p151
        $region30: #{tpu_custom_call.1} parent=11 // pred_check_branch
          %247 = sbr.rel (%p245) target = $region32
        $region31: #{tpu_custom_call.1} parent=11 // pred_region
          _
        $region32: #{tpu_custom_call.1} parent=11 // pred_fallthru
          _
        // Predicated region
        $region33: #{tpu_custom_call.1} parent=11 // pred_check
          %p248 = pneg %p172
        $region34: #{tpu_custom_call.1} parent=11 // pred_check_branch
          %250 = sbr.rel (%p248) target = $region36
        $region35: #{tpu_custom_call.1} parent=11 // pred_region
          _
        $region36: #{tpu_custom_call.1} parent=11 // pred_fallthru
          _
      $region12: #{tpu_custom_call.1} parent=5 // pred_fallthru
        _
      %p251 = scmp.lt.s32.totalorder %s20, 2
      // Predicated region
      $region37: #{tpu_custom_call.1} parent=5 // pred_check
        %p252 = pneg %p251
      $region38: #{tpu_custom_call.1} parent=5 // pred_check_branch
        %254 = sbr.rel (%p252) target = $region40
      $region39: #{tpu_custom_call.1} parent=5 // pred_region
        // Predicated region
        $region41: #{tpu_custom_call.1} parent=39 // pred_check
          %p255 = pneg %p40
        $region42: #{tpu_custom_call.1} parent=39 // pred_check_branch
          %257 = sbr.rel (%p255) target = $region44
        $region43: #{tpu_custom_call.1} parent=39 // pred_region
          %s258 = sand.u32 %s30, 1
          %s259 = scalar_lea.sflag [#allocation5], %s258
          %s260 = sand.u32 %s30, 1
          %s261 = smul.addr %s260, 256
          %s262 = scalar_lea.vmem [#allocation4], %s261
          %s264 = ssub.s32 4096, 4096
          %265 = vsyncadd %s259, %s264
          %s266 = smul.addr %s20, 32
          %s267 = smul.addr %s266, 128
          %s268 = scalar_lea.hbm %s0, %s267
          %s269 = sshll.u32 %s262, 4
          %s270 = int_to_ptr.vmem [resolvable:$true] %s269
          %275 = dma.hbm_to_vmem [thread:$0]  %s268, 4096, %s270, %s259, 256, 256, 16
        $region44: #{tpu_custom_call.1} parent=39 // pred_fallthru
          _
      $region40: #{tpu_custom_call.1} parent=5 // pred_fallthru
        _
      %p276 = scmp.le.s32.totalorder 1, %s20
      %p277 = scmp.lt.s32.totalorder %s20, 3
      %p278 = pnand %p276, %p277
      %p279 = pneg %p278
      // Predicated region
      $region45: #{tpu_custom_call.1} parent=5 // pred_check
        _
      $region46: #{tpu_custom_call.1} parent=5 // pred_check_branch
        %281 = sbr.rel (%p278) target = $region48
      $region47: #{tpu_custom_call.1} parent=5 // pred_region
        %s282 = ssub.s32 %s20, 1
        %s283 = sand.u32 %s33, 1
        %s284 = scalar_lea.sflag [#allocation5], %s283
        %s285 = sand.u32 %s33, 1
        %s286 = smul.addr %s285, 256
        %s287 = scalar_lea.vmem [#allocation4], %s286
        // Predicated region
        $region49: #{tpu_custom_call.1} parent=47 // pred_check
          %p288 = pneg %p46
        $region50: #{tpu_custom_call.1} parent=47 // pred_check_branch
          %290 = sbr.rel (%p288) target = $region52
        $region51: #{tpu_custom_call.1} parent=47 // pred_region
          %291 = dma.done %s284, 4096
        $region52: #{tpu_custom_call.1} parent=47 // pred_fallthru
          _
        // Predicated region
        $region53: #{tpu_custom_call.1} parent=47 // pred_check
          %p292 = pneg %p67
        $region54: #{tpu_custom_call.1} parent=47 // pred_check_branch
          %294 = sbr.rel (%p292) target = $region56
        $region55: #{tpu_custom_call.1} parent=47 // pred_region
          %295 = dma.done [#allocation8], 18432
        $region56: #{tpu_custom_call.1} parent=47 // pred_fallthru
          _
        // Predicated region
        $region57: #{tpu_custom_call.1} parent=47 // pred_check
          %p296 = pneg %p130
        $region58: #{tpu_custom_call.1} parent=47 // pred_check_branch
          %298 = sbr.rel (%p296) target = $region60
        $region59: #{tpu_custom_call.1} parent=47 // pred_region
          %299 = dma.done [#allocation8], 18432
        $region60: #{tpu_custom_call.1} parent=47 // pred_fallthru
          _
        %s300 = sand.u32 %s33, 1
        %s301 = scalar_lea.sflag [#allocation5], %s300
        %s302 = sand.u32 %s33, 1
        %s303 = smul.addr %s302, 256
        %s304 = scalar_lea.vmem [#allocation4], %s303
        %p305 = pneg %p46
        %p306 = pneg %p43
        %p307 = pneg %p67
        %p308 = pneg %p64
        %p309 = pneg %p88
        %p310 = pneg %p85
        %p311 = pneg %p109
        %p312 = pneg %p106
        %p313 = pneg %p130
        %p314 = pneg %p127
        %p315 = pneg %p151
        %p316 = pneg %p148
        %p317 = pneg %p172
        %p318 = pneg %p169
        %p319 = pneg %p198
        %p320 = pneg %p195
        %s321 = sand.u32 %s185, 1
        %s322 = scalar_lea.sflag [#allocation6], %s321
        %s323 = sand.u32 %s185, 1
        %s324 = smul.addr %s323, 64
        %s325 = scalar_lea.vmem [#allocation10], %s324
        %v326 = vld [vmem:[%s287] sm:$0xff]
        %v327 = vld [vmem:[%s287 + $0x8] sm:$0xff]
        %v328 = vld [vmem:[%s287 + $0x10] sm:$0xff]
        %v329 = vld [vmem:[%s287 + $0x18] sm:$0xff]
        %v330 = vld [vmem:[%s287 + $0x20] sm:$0xff]
        %v331 = vld [vmem:[%s287 + $0x28] sm:$0xff]
        %v332 = vld [vmem:[%s287 + $0x30] sm:$0xff]
        %v333 = vld [vmem:[%s287 + $0x38] sm:$0xff]
        %v334 = vld [vmem:[%s287 + $0x40] sm:$0xff]
        %v335 = vld [vmem:[%s287 + $0x48] sm:$0xff]
        %v336 = vld [vmem:[%s287 + $0x50] sm:$0xff]
        %v337 = vld [vmem:[%s287 + $0x58] sm:$0xff]
        %v338 = vld [vmem:[%s287 + $0x60] sm:$0xff]
        %v339 = vld [vmem:[%s287 + $0x68] sm:$0xff]
        %v340 = vld [vmem:[%s287 + $0x70] sm:$0xff]
        %v341 = vld [vmem:[%s287 + $0x78] sm:$0xff]
        %v342 = vld [vmem:[%s287 + $0x80] sm:$0xff]
        %v343 = vld [vmem:[%s287 + $0x88] sm:$0xff]
        %v344 = vld [vmem:[%s287 + $0x90] sm:$0xff]
        %v345 = vld [vmem:[%s287 + $0x98] sm:$0xff]
        %v346 = vld [vmem:[%s287 + $0xa0] sm:$0xff]
        %v347 = vld [vmem:[%s287 + $0xa8] sm:$0xff]
        %v348 = vld [vmem:[%s287 + $0xb0] sm:$0xff]
        %v349 = vld [vmem:[%s287 + $0xb8] sm:$0xff]
        %v350 = vld [vmem:[%s287 + $0xc0] sm:$0xff]
        %v351 = vld [vmem:[%s287 + $0xc8] sm:$0xff]
        %v352 = vld [vmem:[%s287 + $0xd0] sm:$0xff]
        %v353 = vld [vmem:[%s287 + $0xd8] sm:$0xff]
        %v354 = vld [vmem:[%s287 + $0xe0] sm:$0xff]
        %v355 = vld [vmem:[%s287 + $0xe8] sm:$0xff]
        %v356 = vld [vmem:[%s287 + $0xf0] sm:$0xff]
        %v357 = vld [vmem:[%s287 + $0xf8] sm:$0xff]
        %v358 = vmax.f32 %v326, %v328
        %v359 = vmax.f32 %v327, %v329
        %v360 = vmax.f32 %v330, %v332
        %v361 = vmax.f32 %v331, %v333
        %v362 = vmax.f32 %v334, %v336
        %v363 = vmax.f32 %v335, %v337
        %v364 = vmax.f32 %v338, %v340
        %v365 = vmax.f32 %v339, %v341
        %v366 = vmax.f32 %v342, %v344
        %v367 = vmax.f32 %v343, %v345
        %v368 = vmax.f32 %v346, %v348
        %v369 = vmax.f32 %v347, %v349
        %v370 = vmax.f32 %v350, %v352
        %v371 = vmax.f32 %v351, %v353
        %v372 = vmax.f32 %v354, %v356
        %v373 = vmax.f32 %v355, %v357
        %v374 = vmax.f32 %v358, %v359
        %v375 = vmax.f32 %v360, %v361
        %v376 = vmax.f32 %v362, %v363
        %v377 = vmax.f32 %v364, %v365
        %v378 = vmax.f32 %v366, %v367
        %v379 = vmax.f32 %v368, %v369
        %v380 = vmax.f32 %v370, %v371
        %v381 = vmax.f32 %v372, %v373
        %382 = vst [vmem:[#allocation2 + $0x10] sm:$0xff] %v374
        %383 = vst [vmem:[#allocation2 + $0x18] sm:$0xff] %v375
        %384 = vst [vmem:[#allocation2 + $0x20] sm:$0xff] %v376
        %385 = vst [vmem:[#allocation2 + $0x28] sm:$0xff] %v377
        %386 = vst [vmem:[#allocation2 + $0x30] sm:$0xff] %v378
        %387 = vst [vmem:[#allocation2 + $0x38] sm:$0xff] %v379
        %388 = vst [vmem:[#allocation2 + $0x40] sm:$0xff] %v380
        %389 = vst [vmem:[#allocation2 + $0x48] sm:$0xff] %v381
        %v390 = vlaneseq
        %v391 = vshrl.u32 %v390, 7
        %v392 = vld [vmem:[#allocation2 + $0xf] sm:$0xff]
        %v393 = vld [vmem:[#allocation2 + $0x17] sm:$0xff]
        %v394 = vld [vmem:[#allocation2 + $0x1f] sm:$0xff]
        %v395 = vld [vmem:[#allocation2 + $0x27] sm:$0xff]
        %v396 = vld [vmem:[#allocation2 + $0x2f] sm:$0xff]
        %v397 = vld [vmem:[#allocation2 + $0x37] sm:$0xff]
        %v398 = vld [vmem:[#allocation2 + $0x3f] sm:$0xff]
        %vm399 = vcmp.ge.s32.totalorder %v391, 1
        %v400 = vsel %vm399, %v392, 0.0
        %v401 = vsel %vm399, %v393, 0.0
        %v402 = vsel %vm399, %v394, 0.0
        %v403 = vsel %vm399, %v395, 0.0
        %v404 = vsel %vm399, %v396, 0.0
        %v405 = vsel %vm399, %v397, 0.0
        %v406 = vsel %vm399, %v398, 0.0
        %v407 = vld [vmem:[#allocation2 + $0x10] sm:$0xff]
        %v408 = vld [vmem:[#allocation2 + $0x18] sm:$0xff]
        %v409 = vld [vmem:[#allocation2 + $0x20] sm:$0xff]
        %v410 = vld [vmem:[#allocation2 + $0x28] sm:$0xff]
        %v411 = vld [vmem:[#allocation2 + $0x30] sm:$0xff]
        %v412 = vld [vmem:[#allocation2 + $0x38] sm:$0xff]
        %v413 = vld [vmem:[#allocation2 + $0x40] sm:$0xff]
        %v414 = vld [vmem:[#allocation2 + $0x11] sm:$0xff]
        %v415 = vld [vmem:[#allocation2 + $0x19] sm:$0xff]
        %v416 = vld [vmem:[#allocation2 + $0x21] sm:$0xff]
        %v417 = vld [vmem:[#allocation2 + $0x29] sm:$0xff]
        %v418 = vld [vmem:[#allocation2 + $0x31] sm:$0xff]
        %v419 = vld [vmem:[#allocation2 + $0x39] sm:$0xff]
        %v420 = vld [vmem:[#allocation2 + $0x41] sm:$0xff]
        %vm421 = vcmp.le.s32.totalorder %v391, 6
        %v422 = vsel %vm421, %v414, 0.0
        %v423 = vsel %vm421, %v415, 0.0
        %v424 = vsel %vm421, %v416, 0.0
        %v425 = vsel %vm421, %v417, 0.0
        %v426 = vsel %vm421, %v418, 0.0
        %v427 = vsel %vm421, %v419, 0.0
        %v428 = vsel %vm421, %v420, 0.0
        %v429 = vld [vmem:[#allocation2 + $0x47] sm:$0xff]
        %v430 = vsel %vm399, %v429, 0.0
        %v431 = vld [vmem:[#allocation2 + $0x48] sm:$0xff]
        %v432 = vld [vmem:[#allocation2 + $0x49] sm:$0xff]
        %v433 = vsel %vm421, %v432, 0.0
        %v434 = vld [vmem:[#allocation7] sm:$0xff]
        %v435 = vld [vmem:[#allocation7 + $0x8] sm:$0xff]
        %v436 = vld [vmem:[#allocation7 + $0x10] sm:$0xff]
        %v437 = vld [vmem:[#allocation7 + $0x18] sm:$0xff]
        %v438 = vld [vmem:[#allocation7 + $0x20] sm:$0xff]
        %v439 = vld [vmem:[#allocation7 + $0x28] sm:$0xff]
        %v440 = vld [vmem:[#allocation7 + $0x30] sm:$0xff]
        %v441 = vld [vmem:[#allocation7 + $0x38] sm:$0xff]
        %v442 = vld [vmem:[#allocation7 + $0x40] sm:$0xff]
        %v443 = vld [vmem:[#allocation7 + $0x48] sm:$0xff]
        %v444 = vld [vmem:[#allocation7 + $0x50] sm:$0xff]
        %v445 = vld [vmem:[#allocation7 + $0x58] sm:$0xff]
        %v446 = vld [vmem:[#allocation7 + $0x60] sm:$0xff]
        %v447 = vld [vmem:[#allocation7 + $0x68] sm:$0xff]
        %v448 = vld [vmem:[#allocation7 + $0x70] sm:$0xff]
        %v449 = vld [vmem:[#allocation7 + $0x78] sm:$0xff]
        %v450 = vld [vmem:[#allocation7 + $0x80] sm:$0xff]
        %v451 = vld [vmem:[#allocation7 + $0x88] sm:$0xff]
        %v452 = vld [vmem:[#allocation7 + $0x90] sm:$0xff]
        %v453 = vld [vmem:[#allocation7 + $0x98] sm:$0xff]
        %v454 = vld [vmem:[#allocation7 + $0xa0] sm:$0xff]
        %v455 = vld [vmem:[#allocation7 + $0xa8] sm:$0xff]
        %v456 = vld [vmem:[#allocation7 + $0xb0] sm:$0xff]
        %v457 = vld [vmem:[#allocation7 + $0xb8] sm:$0xff]
        %v458 = vld [vmem:[#allocation7 + $0xc0] sm:$0xff]
        %v459 = vld [vmem:[#allocation7 + $0xc8] sm:$0xff]
        %v460 = vld [vmem:[#allocation7 + $0xd0] sm:$0xff]
        %v461 = vld [vmem:[#allocation7 + $0xd8] sm:$0xff]
        %v462 = vld [vmem:[#allocation7 + $0xe0] sm:$0xff]
        %v463 = vld [vmem:[#allocation7 + $0xe8] sm:$0xff]
        %v464 = vld [vmem:[#allocation7 + $0xf0] sm:$0xff]
        %v465 = vld [vmem:[#allocation7 + $0xf8] sm:$0xff]
        %v466 = vld [vmem:[#allocation7 + $0x100] sm:$0xff]
        %v467 = vld [vmem:[#allocation7 + $0x108] sm:$0xff]
        %v468 = vld [vmem:[#allocation7 + $0x110] sm:$0xff]
        %v469 = vld [vmem:[#allocation7 + $0x118] sm:$0xff]
        %v470 = vld [vmem:[#allocation7 + $0x120] sm:$0xff]
        %v471 = vld [vmem:[#allocation7 + $0x128] sm:$0xff]
        %v472 = vld [vmem:[#allocation7 + $0x130] sm:$0xff]
        %v473 = vld [vmem:[#allocation7 + $0x138] sm:$0xff]
        %v474 = vld [vmem:[#allocation7 + $0x140] sm:$0xff]
        %v475 = vld [vmem:[#allocation7 + $0x148] sm:$0xff]
        %v476 = vld [vmem:[#allocation7 + $0x150] sm:$0xff]
        %v477 = vld [vmem:[#allocation7 + $0x158] sm:$0xff]
        %v478 = vld [vmem:[#allocation7 + $0x160] sm:$0xff]
        %v479 = vld [vmem:[#allocation7 + $0x168] sm:$0xff]
        %v480 = vld [vmem:[#allocation7 + $0x170] sm:$0xff]
        %v481 = vld [vmem:[#allocation7 + $0x178] sm:$0xff]
        %v482 = vld [vmem:[#allocation7 + $0x180] sm:$0xff]
        %v483 = vld [vmem:[#allocation7 + $0x188] sm:$0xff]
        %v484 = vld [vmem:[#allocation7 + $0x190] sm:$0xff]
        %v485 = vld [vmem:[#allocation7 + $0x198] sm:$0xff]
        %v486 = vld [vmem:[#allocation7 + $0x1a0] sm:$0xff]
        %v487 = vld [vmem:[#allocation7 + $0x1a8] sm:$0xff]
        %v488 = vld [vmem:[#allocation7 + $0x1b0] sm:$0xff]
        %v489 = vld [vmem:[#allocation7 + $0x1b8] sm:$0xff]
        %v490 = vld [vmem:[#allocation7 + $0x1c0] sm:$0xff]
        %v491 = vld [vmem:[#allocation7 + $0x1c8] sm:$0xff]
        %v492 = vld [vmem:[#allocation7 + $0x1d0] sm:$0xff]
        %v493 = vld [vmem:[#allocation7 + $0x1d8] sm:$0xff]
        %v494 = vld [vmem:[#allocation7 + $0x1e0] sm:$0xff]
        %v495 = vld [vmem:[#allocation7 + $0x1e8] sm:$0xff]
        %v496 = vld [vmem:[#allocation7 + $0x1f0] sm:$0xff]
        %v497 = vld [vmem:[#allocation7 + $0x1f8] sm:$0xff]
        %v498 = vld [vmem:[#allocation7 + $0x200] sm:$0xff]
        %v499 = vld [vmem:[#allocation7 + $0x208] sm:$0xff]
        %v500 = vld [vmem:[#allocation7 + $0x210] sm:$0xff]
        %v501 = vld [vmem:[#allocation7 + $0x218] sm:$0xff]
        %v502 = vld [vmem:[#allocation7 + $0x220] sm:$0xff]
        %v503 = vld [vmem:[#allocation7 + $0x228] sm:$0xff]
        %v504 = vld [vmem:[#allocation7 + $0x230] sm:$0xff]
        %v505 = vld [vmem:[#allocation7 + $0x238] sm:$0xff]
        %v506 = vld [vmem:[#allocation7 + $0x240] sm:$0xff]
        %v507 = vld [vmem:[#allocation7 + $0x248] sm:$0xff]
        %v508 = vld [vmem:[#allocation7 + $0x250] sm:$0xff]
        %v509 = vld [vmem:[#allocation7 + $0x258] sm:$0xff]
        %v510 = vld [vmem:[#allocation7 + $0x260] sm:$0xff]
        %v511 = vld [vmem:[#allocation7 + $0x268] sm:$0xff]
        %v512 = vld [vmem:[#allocation7 + $0x270] sm:$0xff]
        %v513 = vld [vmem:[#allocation7 + $0x278] sm:$0xff]
        %v514 = vld [vmem:[#allocation7 + $0x280] sm:$0xff]
        %v515 = vld [vmem:[#allocation7 + $0x288] sm:$0xff]
        %v516 = vld [vmem:[#allocation7 + $0x290] sm:$0xff]
        %v517 = vld [vmem:[#allocation7 + $0x298] sm:$0xff]
        %v518 = vld [vmem:[#allocation7 + $0x2a0] sm:$0xff]
        %v519 = vld [vmem:[#allocation7 + $0x2a8] sm:$0xff]
        %v520 = vld [vmem:[#allocation7 + $0x2b0] sm:$0xff]
        %v521 = vld [vmem:[#allocation7 + $0x2b8] sm:$0xff]
        %v522 = vld [vmem:[#allocation7 + $0x2c0] sm:$0xff]
        %v523 = vld [vmem:[#allocation7 + $0x2c8] sm:$0xff]
        %v524 = vld [vmem:[#allocation7 + $0x2d0] sm:$0xff]
        %v525 = vld [vmem:[#allocation7 + $0x2d8] sm:$0xff]
        %v526 = vld [vmem:[#allocation7 + $0x2e0] sm:$0xff]
        %v527 = vld [vmem:[#allocation7 + $0x2e8] sm:$0xff]
        %v528 = vld [vmem:[#allocation7 + $0x2f0] sm:$0xff]
        %v529 = vld [vmem:[#allocation7 + $0x2f8] sm:$0xff]
        %v530 = vld [vmem:[#allocation7 + $0x300] sm:$0xff]
        %v531 = vld [vmem:[#allocation7 + $0x308] sm:$0xff]
        %v532 = vld [vmem:[#allocation7 + $0x310] sm:$0xff]
        %v533 = vld [vmem:[#allocation7 + $0x318] sm:$0xff]
        %v534 = vld [vmem:[#allocation7 + $0x320] sm:$0xff]
        %v535 = vld [vmem:[#allocation7 + $0x328] sm:$0xff]
        %v536 = vld [vmem:[#allocation7 + $0x330] sm:$0xff]
        %v537 = vld [vmem:[#allocation7 + $0x338] sm:$0xff]
        %v538 = vld [vmem:[#allocation7 + $0x340] sm:$0xff]
        %v539 = vld [vmem:[#allocation7 + $0x348] sm:$0xff]
        %v540 = vld [vmem:[#allocation7 + $0x350] sm:$0xff]
        %v541 = vld [vmem:[#allocation7 + $0x358] sm:$0xff]
        %v542 = vld [vmem:[#allocation7 + $0x360] sm:$0xff]
        %v543 = vld [vmem:[#allocation7 + $0x368] sm:$0xff]
        %v544 = vld [vmem:[#allocation7 + $0x370] sm:$0xff]
        %v545 = vld [vmem:[#allocation7 + $0x378] sm:$0xff]
        %v546 = vld [vmem:[#allocation7 + $0x380] sm:$0xff]
        %v547 = vld [vmem:[#allocation7 + $0x388] sm:$0xff]
        %v548 = vld [vmem:[#allocation7 + $0x390] sm:$0xff]
        %v549 = vld [vmem:[#allocation7 + $0x398] sm:$0xff]
        %v550 = vld [vmem:[#allocation7 + $0x3a0] sm:$0xff]
        %v551 = vld [vmem:[#allocation7 + $0x3a8] sm:$0xff]
        %v552 = vld [vmem:[#allocation7 + $0x3b0] sm:$0xff]
        %v553 = vld [vmem:[#allocation7 + $0x3b8] sm:$0xff]
        %v554 = vld [vmem:[#allocation7 + $0x3c0] sm:$0xff]
        %v555 = vld [vmem:[#allocation7 + $0x3c8] sm:$0xff]
        %v556 = vld [vmem:[#allocation7 + $0x3d0] sm:$0xff]
        %v557 = vld [vmem:[#allocation7 + $0x3d8] sm:$0xff]
        %v558 = vld [vmem:[#allocation7 + $0x3e0] sm:$0xff]
        %v559 = vld [vmem:[#allocation7 + $0x3e8] sm:$0xff]
        %v560 = vld [vmem:[#allocation7 + $0x3f0] sm:$0xff]
        %v561 = vld [vmem:[#allocation7 + $0x3f8] sm:$0xff]
        %v562 = vld [vmem:[#allocation7 + $0x400] sm:$0xff]
        %v563 = vld [vmem:[#allocation7 + $0x408] sm:$0xff]
        %v564 = vld [vmem:[#allocation7 + $0x410] sm:$0xff]
        %v565 = vld [vmem:[#allocation7 + $0x418] sm:$0xff]
        %v566 = vld [vmem:[#allocation7 + $0x420] sm:$0xff]
        %v567 = vld [vmem:[#allocation7 + $0x428] sm:$0xff]
        %v568 = vld [vmem:[#allocation7 + $0x430] sm:$0xff]
        %v569 = vld [vmem:[#allocation7 + $0x438] sm:$0xff]
        %v570 = vld [vmem:[#allocation7 + $0x440] sm:$0xff]
        %v571 = vld [vmem:[#allocation7 + $0x448] sm:$0xff]
        %v572 = vld [vmem:[#allocation7 + $0x450] sm:$0xff]
        %v573 = vld [vmem:[#allocation7 + $0x458] sm:$0xff]
        %v574 = vld [vmem:[#allocation7 + $0x460] sm:$0xff]
        %v575 = vld [vmem:[#allocation7 + $0x468] sm:$0xff]
        %v576 = vld [vmem:[#allocation7 + $0x470] sm:$0xff]
        %v577 = vld [vmem:[#allocation7 + $0x478] sm:$0xff]
        %578 = vmatprep.subr.mxu0 0.0
        %579 = vmatpush1.msra.mxu0 %v434
        %580 = vmatprep.subr.mxu0 0.0
        %581 = vmatpush1.msra.mxu0 %v435
        %582 = vmatprep.subr.mxu0 0.0
        %583 = vmatpush1.msra.mxu0 %v436
        %584 = vmatprep.subr.mxu0 0.0
        %585 = vmatpush1.msra.mxu0 %v437
        %586 = vmatprep.subr.mxu0 0.0
        %587 = vmatpush1.msra.mxu0 %v438
        %588 = vmatprep.subr.mxu0 0.0
        %589 = vmatpush1.msra.mxu0 %v439
        %590 = vmatprep.subr.mxu0 0.0
        %591 = vmatpush1.msra.mxu0 %v440
        %592 = vmatprep.subr.mxu0 0.0
        %593 = vmatpush1.msra.mxu0 %v441
        %594 = vmatprep.subr.mxu0 0.0
        %595 = vmatpush1.msra.mxu0 %v442
        %596 = vmatprep.subr.mxu0 0.0
        %597 = vmatpush1.msra.mxu0 %v443
        %598 = vmatprep.subr.mxu0 0.0
        %599 = vmatpush1.msra.mxu0 %v444
        %600 = vmatprep.subr.mxu0 0.0
        %601 = vmatpush1.msra.mxu0 %v445
        %602 = vmatprep.subr.mxu0 0.0
        %603 = vmatpush1.msra.mxu0 %v446
        %604 = vmatprep.subr.mxu0 0.0
        %605 = vmatpush1.msra.mxu0 %v447
        %606 = vmatprep.subr.mxu0 0.0
        %607 = vmatpush1.msra.mxu0 %v448
        %608 = vmatprep.subr.mxu0 0.0
        %609 = vmatpush1.msra.mxu0 %v449
        %610 = vmatprep.subr.mxu0 0.0
        %611 = vmatpush1.msra.mxu0 %v450
        %612 = vmatprep.subr.mxu0 0.0
        %613 = vmatpush1.msra.mxu0 %v451
        %614 = vmatprep.subr.mxu0 0.0
        %615 = vmatpush1.msra.mxu0 %v452
        %616 = vmatprep.subr.mxu0 0.0
        %617 = vmatpush1.msra.mxu0 %v453
        %618 = vmatprep.subr.mxu0 0.0
        %619 = vmatpush1.msra.mxu0 %v454
        %620 = vmatprep.subr.mxu0 0.0
        %621 = vmatpush1.msra.mxu0 %v455
        %622 = vmatprep.subr.mxu0 0.0
        %623 = vmatpush1.msra.mxu0 %v456
        %624 = vmatprep.subr.mxu0 0.0
        %625 = vmatpush1.msra.mxu0 %v457
        %626 = vmatprep.subr.mxu0 0.0
        %627 = vmatpush1.msra.mxu0 %v458
        %628 = vmatprep.subr.mxu0 0.0
        %629 = vmatpush1.msra.mxu0 %v459
        %630 = vmatprep.subr.mxu0 0.0
        %631 = vmatpush1.msra.mxu0 %v460
        %632 = vmatprep.subr.mxu0 0.0
        %633 = vmatpush1.msra.mxu0 %v461
        %634 = vmatprep.subr.mxu0 0.0
        %635 = vmatpush1.msra.mxu0 %v462
        %636 = vmatprep.subr.mxu0 0.0
        %637 = vmatpush1.msra.mxu0 %v463
        %638 = vmatprep.subr.mxu0 0.0
        %639 = vmatpush1.msra.mxu0 %v464
        %640 = vmatprep.subr.mxu0 0.0
        %641 = vmatpush1.msra.mxu0 %v465
        %642 = vmatprep.mubr.f32.mxu0 0.0
        %643 = vmatmul.mubr.f32.gmra.mrb[0].mxu0 0.0
        %v644 = vpop.f32.mrb[0].mxu0
        %v645 = vadd.f32 0.0, %v644
        %v646 = vpop.f32.mrb[0].mxu0
        %647 = vmatprep.mubr.f32.mxu0 %v407
        %648 = vmatmul.mubr.f32.gmra.mrb[0].mxu0 %v400
        %v649 = vpop.f32.mrb[0].mxu0
        %v650 = vadd.f32 0.0, %v649
        %v651 = vpop.f32.mrb[0].mxu0
        %652 = vmatprep.mubr.f32.mxu0 %v408
        %653 = vmatmul.mubr.f32.gmra.mrb[0].mxu0 %v401
        %v654 = vpop.f32.mrb[0].mxu0
        %v655 = vadd.f32 0.0, %v654
        %v656 = vpop.f32.mrb[0].mxu0
        %657 = vmatprep.mubr.f32.mxu0 %v409
        %658 = vmatmul.mubr.f32.gmra.mrb[0].mxu0 %v402
        %v659 = vpop.f32.mrb[0].mxu0
        %v660 = vadd.f32 0.0, %v659
        %v661 = vpop.f32.mrb[0].mxu0
        %662 = vmatprep.mubr.f32.mxu0 %v410
        %663 = vmatmul.mubr.f32.gmra.mrb[0].mxu0 %v403
        %v664 = vpop.f32.mrb[0].mxu0
        %v665 = vadd.f32 0.0, %v664
        %v666 = vpop.f32.mrb[0].mxu0
        %667 = vmatprep.mubr.f32.mxu0 %v411
        %668 = vmatmul.mubr.f32.gmra.mrb[0].mxu0 %v404
        %v669 = vpop.f32.mrb[0].mxu0
        %v670 = vadd.f32 0.0, %v669
        %v671 = vpop.f32.mrb[0].mxu0
        %672 = vmatprep.mubr.f32.mxu0 %v412
        %673 = vmatmul.mubr.f32.gmra.mrb[0].mxu0 %v405
        %v674 = vpop.f32.mrb[0].mxu0
        %v675 = vadd.f32 0.0, %v674
        %v676 = vpop.f32.mrb[0].mxu0
        %677 = vmatprep.mubr.f32.mxu0 %v413
        %678 = vmatmul.mubr.f32.gmra.mrb[0].mxu0 %v406
        %v679 = vpop.f32.mrb[0].mxu0
        %v680 = vadd.f32 0.0, %v679
        %v681 = vpop.f32.mrb[0].mxu0
        %682 = vdwg.mxu0
        %683 = vmatprep.subr.mxu0 0.0
        %684 = vmatpush1.msra.mxu0 %v466
        %685 = vmatprep.subr.mxu0 0.0
        %686 = vmatpush1.msra.mxu0 %v467
        %687 = vmatprep.subr.mxu0 0.0
        %688 = vmatpush1.msra.mxu0 %v468
        %689 = vmatprep.subr.mxu0 0.0
        %690 = vmatpush1.msra.mxu0 %v469
        %691 = vmatprep.subr.mxu0 0.0
        %692 = vmatpush1.msra.mxu0 %v470
        %693 = vmatprep.subr.mxu0 0.0
        %694 = vmatpush1.msra.mxu0 %v471
        %695 = vmatprep.subr.mxu0 0.0
        %696 = vmatpush1.msra.mxu0 %v472
        %697 = vmatprep.subr.mxu0 0.0
        %698 = vmatpush1.msra.mxu0 %v473
        %699 = vmatprep.subr.mxu0 0.0
        %700 = vmatpush1.msra.mxu0 %v474
        %701 = vmatprep.subr.mxu0 0.0
        %702 = vmatpush1.msra.mxu0 %v475
        %703 = vmatprep.subr.mxu0 0.0
        %704 = vmatpush1.msra.mxu0 %v476
        %705 = vmatprep.subr.mxu0 0.0
        %706 = vmatpush1.msra.mxu0 %v477
        %707 = vmatprep.subr.mxu0 0.0
        %708 = vmatpush1.msra.mxu0 %v478
        %709 = vmatprep.subr.mxu0 0.0
        %710 = vmatpush1.msra.mxu0 %v479
        %711 = vmatprep.subr.mxu0 0.0
        %712 = vmatpush1.msra.mxu0 %v480
        %713 = vmatprep.subr.mxu0 0.0
        %714 = vmatpush1.msra.mxu0 %v481
        %715 = vmatprep.subr.mxu0 0.0
        %716 = vmatpush1.msra.mxu0 %v482
        %717 = vmatprep.subr.mxu0 0.0
        %718 = vmatpush1.msra.mxu0 %v483
        %719 = vmatprep.subr.mxu0 0.0
        %720 = vmatpush1.msra.mxu0 %v484
        %721 = vmatprep.subr.mxu0 0.0
        %722 = vmatpush1.msra.mxu0 %v485
        %723 = vmatprep.subr.mxu0 0.0
        %724 = vmatpush1.msra.mxu0 %v486
        %725 = vmatprep.subr.mxu0 0.0
        %726 = vmatpush1.msra.mxu0 %v487
        %727 = vmatprep.subr.mxu0 0.0
        %728 = vmatpush1.msra.mxu0 %v488
        %729 = vmatprep.subr.mxu0 0.0
        %730 = vmatpush1.msra.mxu0 %v489
        %731 = vmatprep.subr.mxu0 0.0
        %732 = vmatpush1.msra.mxu0 %v490
        %733 = vmatprep.subr.mxu0 0.0
        %734 = vmatpush1.msra.mxu0 %v491
        %735 = vmatprep.subr.mxu0 0.0
        %736 = vmatpush1.msra.mxu0 %v492
        %737 = vmatprep.subr.mxu0 0.0
        %738 = vmatpush1.msra.mxu0 %v493
        %739 = vmatprep.subr.mxu0 0.0
        %740 = vmatpush1.msra.mxu0 %v494
        %741 = vmatprep.subr.mxu0 0.0
        %742 = vmatpush1.msra.mxu0 %v495
        %743 = vmatprep.subr.mxu0 0.0
        %744 = vmatpush1.msra.mxu0 %v496
        %745 = vmatprep.subr.mxu0 0.0
        %746 = vmatpush1.msra.mxu0 %v497
        %747 = vmatprep.mubr.f32.mxu0 %v400
        %748 = vmatmul.mubr.f32.gmra.mrb[0].mxu0 0.0
        %v749 = vpop.f32.mrb[0].mxu0
        %v750 = vadd.f32 %v645, %v749
        %v751 = vpop.f32.mrb[0].mxu0
        %752 = vmatprep.mubr.f32.mxu0 %v401
        %753 = vmatmul.mubr.f32.gmra.mrb[0].mxu0 %v422
        %v754 = vpop.f32.mrb[0].mxu0
        %v755 = vadd.f32 %v650, %v754
        %v756 = vpop.f32.mrb[0].mxu0
        %757 = vmatprep.mubr.f32.mxu0 %v402
        %758 = vmatmul.mubr.f32.gmra.mrb[0].mxu0 %v423
        %v759 = vpop.f32.mrb[0].mxu0
        %v760 = vadd.f32 %v655, %v759
        %v761 = vpop.f32.mrb[0].mxu0
        %762 = vmatprep.mubr.f32.mxu0 %v403
        %763 = vmatmul.mubr.f32.gmra.mrb[0].mxu0 %v424
        %v764 = vpop.f32.mrb[0].mxu0
        %v765 = vadd.f32 %v660, %v764
        %v766 = vpop.f32.mrb[0].mxu0
        %767 = vmatprep.mubr.f32.mxu0 %v404
        %768 = vmatmul.mubr.f32.gmra.mrb[0].mxu0 %v425
        %v769 = vpop.f32.mrb[0].mxu0
        %v770 = vadd.f32 %v665, %v769
        %v771 = vpop.f32.mrb[0].mxu0
        %772 = vmatprep.mubr.f32.mxu0 %v405
        %773 = vmatmul.mubr.f32.gmra.mrb[0].mxu0 %v426
        %v774 = vpop.f32.mrb[0].mxu0
        %v775 = vadd.f32 %v670, %v774
        %v776 = vpop.f32.mrb[0].mxu0
        %777 = vmatprep.mubr.f32.mxu0 %v406
        %778 = vmatmul.mubr.f32.gmra.mrb[0].mxu0 %v427
        %v779 = vpop.f32.mrb[0].mxu0
        %v780 = vadd.f32 %v675, %v779
        %v781 = vpop.f32.mrb[0].mxu0
        %782 = vmatprep.mubr.f32.mxu0 %v430
        %783 = vmatmul.mubr.f32.gmra.mrb[0].mxu0 %v428
        %v784 = vpop.f32.mrb[0].mxu0
        %v785 = vadd.f32 %v680, %v784
        %v786 = vpop.f32.mrb[0].mxu0
        %787 = vdwg.mxu0
        %788 = vmatprep.subr.mxu0 0.0
        %789 = vmatpush1.msra.mxu0 %v498
        %790 = vmatprep.subr.mxu0 0.0
        %791 = vmatpush1.msra.mxu0 %v499
        %792 = vmatprep.subr.mxu0 0.0
        %793 = vmatpush1.msra.mxu0 %v500
        %794 = vmatprep.subr.mxu0 0.0
        %795 = vmatpush1.msra.mxu0 %v501
        %796 = vmatprep.subr.mxu0 0.0
        %797 = vmatpush1.msra.mxu0 %v502
        %798 = vmatprep.subr.mxu0 0.0
        %799 = vmatpush1.msra.mxu0 %v503
        %800 = vmatprep.subr.mxu0 0.0
        %801 = vmatpush1.msra.mxu0 %v504
        %802 = vmatprep.subr.mxu0 0.0
        %803 = vmatpush1.msra.mxu0 %v505
        %804 = vmatprep.subr.mxu0 0.0
        %805 = vmatpush1.msra.mxu0 %v506
        %806 = vmatprep.subr.mxu0 0.0
        %807 = vmatpush1.msra.mxu0 %v507
        %808 = vmatprep.subr.mxu0 0.0
        %809 = vmatpush1.msra.mxu0 %v508
        %810 = vmatprep.subr.mxu0 0.0
        %811 = vmatpush1.msra.mxu0 %v509
        %812 = vmatprep.subr.mxu0 0.0
        %813 = vmatpush1.msra.mxu0 %v510
        %814 = vmatprep.subr.mxu0 0.0
        %815 = vmatpush1.msra.mxu0 %v511
        %816 = vmatprep.subr.mxu0 0.0
        %817 = vmatpush1.msra.mxu0 %v512
        %818 = vmatprep.subr.mxu0 0.0
        %819 = vmatpush1.msra.mxu0 %v513
        %820 = vmatprep.subr.mxu0 0.0
        %821 = vmatpush1.msra.mxu0 %v514
        %822 = vmatprep.subr.mxu0 0.0
        %823 = vmatpush1.msra.mxu0 %v515
        %824 = vmatprep.subr.mxu0 0.0
        %825 = vmatpush1.msra.mxu0 %v516
        %826 = vmatprep.subr.mxu0 0.0
        %827 = vmatpush1.msra.mxu0 %v517
        %828 = vmatprep.subr.mxu0 0.0
        %829 = vmatpush1.msra.mxu0 %v518
        %830 = vmatprep.subr.mxu0 0.0
        %831 = vmatpush1.msra.mxu0 %v519
        %832 = vmatprep.subr.mxu0 0.0
        %833 = vmatpush1.msra.mxu0 %v520
        %834 = vmatprep.subr.mxu0 0.0
        %835 = vmatpush1.msra.mxu0 %v521
        %836 = vmatprep.subr.mxu0 0.0
        %837 = vmatpush1.msra.mxu0 %v522
        %838 = vmatprep.subr.mxu0 0.0
        %839 = vmatpush1.msra.mxu0 %v523
        %840 = vmatprep.subr.mxu0 0.0
        %841 = vmatpush1.msra.mxu0 %v524
        %842 = vmatprep.subr.mxu0 0.0
        %843 = vmatpush1.msra.mxu0 %v525
        %844 = vmatprep.subr.mxu0 0.0
        %845 = vmatpush1.msra.mxu0 %v526
        %846 = vmatprep.subr.mxu0 0.0
        %847 = vmatpush1.msra.mxu0 %v527
        %848 = vmatprep.subr.mxu0 0.0
        %849 = vmatpush1.msra.mxu0 %v528
        %850 = vmatprep.subr.mxu0 0.0
        %851 = vmatpush1.msra.mxu0 %v529
        %852 = vmatprep.mubr.f32.mxu0 %v422
        %853 = vmatmul.mubr.f32.gmra.mrb[0].mxu0 %v407
        %v854 = vpop.f32.mrb[0].mxu0
        %v855 = vadd.f32 %v750, %v854
        %v856 = vpop.f32.mrb[0].mxu0
        %857 = vmatprep.mubr.f32.mxu0 %v423
        %858 = vmatmul.mubr.f32.gmra.mrb[0].mxu0 %v408
        %v859 = vpop.f32.mrb[0].mxu0
        %v860 = vadd.f32 %v755, %v859
        %v861 = vpop.f32.mrb[0].mxu0
        %862 = vmatprep.mubr.f32.mxu0 %v424
        %863 = vmatmul.mubr.f32.gmra.mrb[0].mxu0 %v409
        %v864 = vpop.f32.mrb[0].mxu0
        %v865 = vadd.f32 %v760, %v864
        %v866 = vpop.f32.mrb[0].mxu0
        %867 = vmatprep.mubr.f32.mxu0 %v425
        %868 = vmatmul.mubr.f32.gmra.mrb[0].mxu0 %v410
        %v869 = vpop.f32.mrb[0].mxu0
        %v870 = vadd.f32 %v765, %v869
        %v871 = vpop.f32.mrb[0].mxu0
        %872 = vmatprep.mubr.f32.mxu0 %v426
        %873 = vmatmul.mubr.f32.gmra.mrb[0].mxu0 %v411
        %v874 = vpop.f32.mrb[0].mxu0
        %v875 = vadd.f32 %v770, %v874
        %v876 = vpop.f32.mrb[0].mxu0
        %877 = vmatprep.mubr.f32.mxu0 %v427
        %878 = vmatmul.mubr.f32.gmra.mrb[0].mxu0 %v412
        %v879 = vpop.f32.mrb[0].mxu0
        %v880 = vadd.f32 %v775, %v879
        %v881 = vpop.f32.mrb[0].mxu0
        %882 = vmatprep.mubr.f32.mxu0 %v428
        %883 = vmatmul.mubr.f32.gmra.mrb[0].mxu0 %v413
        %v884 = vpop.f32.mrb[0].mxu0
        %v885 = vadd.f32 %v780, %v884
        %v886 = vpop.f32.mrb[0].mxu0
        %887 = vmatprep.mubr.f32.mxu0 %v433
        %888 = vmatmul.mubr.f32.gmra.mrb[0].mxu0 %v431
        %v889 = vpop.f32.mrb[0].mxu0
        %v890 = vadd.f32 %v785, %v889
        %v891 = vpop.f32.mrb[0].mxu0
        %892 = vdwg.mxu0
        %893 = vmatprep.subr.mxu0 0.0
        %894 = vmatpush1.msra.mxu0 %v530
        %895 = vmatprep.subr.mxu0 0.0
        %896 = vmatpush1.msra.mxu0 %v531
        %897 = vmatprep.subr.mxu0 0.0
        %898 = vmatpush1.msra.mxu0 %v532
        %899 = vmatprep.subr.mxu0 0.0
        %900 = vmatpush1.msra.mxu0 %v533
        %901 = vmatprep.subr.mxu0 0.0
        %902 = vmatpush1.msra.mxu0 %v534
        %903 = vmatprep.subr.mxu0 0.0
        %904 = vmatpush1.msra.mxu0 %v535
        %905 = vmatprep.subr.mxu0 0.0
        %906 = vmatpush1.msra.mxu0 %v536
        %907 = vmatprep.subr.mxu0 0.0
        %908 = vmatpush1.msra.mxu0 %v537
        %909 = vmatprep.subr.mxu0 0.0
        %910 = vmatpush1.msra.mxu0 %v538
        %911 = vmatprep.subr.mxu0 0.0
        %912 = vmatpush1.msra.mxu0 %v539
        %913 = vmatprep.subr.mxu0 0.0
        %914 = vmatpush1.msra.mxu0 %v540
        %915 = vmatprep.subr.mxu0 0.0
        %916 = vmatpush1.msra.mxu0 %v541
        %917 = vmatprep.subr.mxu0 0.0
        %918 = vmatpush1.msra.mxu0 %v542
        %919 = vmatprep.subr.mxu0 0.0
        %920 = vmatpush1.msra.mxu0 %v543
        %921 = vmatprep.subr.mxu0 0.0
        %922 = vmatpush1.msra.mxu0 %v544
        %923 = vmatprep.subr.mxu0 0.0
        %924 = vmatpush1.msra.mxu0 %v545
        %925 = vmatprep.subr.mxu0 0.0
        %926 = vmatpush1.msra.mxu0 %v546
        %927 = vmatprep.subr.mxu0 0.0
        %928 = vmatpush1.msra.mxu0 %v547
        %929 = vmatprep.subr.mxu0 0.0
        %930 = vmatpush1.msra.mxu0 %v548
        %931 = vmatprep.subr.mxu0 0.0
        %932 = vmatpush1.msra.mxu0 %v549
        %933 = vmatprep.subr.mxu0 0.0
        %934 = vmatpush1.msra.mxu0 %v550
        %935 = vmatprep.subr.mxu0 0.0
        %936 = vmatpush1.msra.mxu0 %v551
        %937 = vmatprep.subr.mxu0 0.0
        %938 = vmatpush1.msra.mxu0 %v552
        %939 = vmatprep.subr.mxu0 0.0
        %940 = vmatpush1.msra.mxu0 %v553
        %941 = vmatprep.subr.mxu0 0.0
        %942 = vmatpush1.msra.mxu0 %v554
        %943 = vmatprep.subr.mxu0 0.0
        %944 = vmatpush1.msra.mxu0 %v555
        %945 = vmatprep.subr.mxu0 0.0
        %946 = vmatpush1.msra.mxu0 %v556
        %947 = vmatprep.subr.mxu0 0.0
        %948 = vmatpush1.msra.mxu0 %v557
        %949 = vmatprep.subr.mxu0 0.0
        %950 = vmatpush1.msra.mxu0 %v558
        %951 = vmatprep.subr.mxu0 0.0
        %952 = vmatpush1.msra.mxu0 %v559
        %953 = vmatprep.subr.mxu0 0.0
        %954 = vmatpush1.msra.mxu0 %v560
        %955 = vmatprep.subr.mxu0 0.0
        %956 = vmatpush1.msra.mxu0 %v561
        %957 = vmatprep.mubr.f32.mxu0 %v408
        %958 = vmatmul.mubr.f32.gmra.mrb[0].mxu0 %v401
        %v959 = vpop.f32.mrb[0].mxu0
        %v960 = vadd.f32 %v855, %v959
        %v961 = vpop.f32.mrb[0].mxu0
        %962 = vmatprep.mubr.f32.mxu0 %v409
        %963 = vmatmul.mubr.f32.gmra.mrb[0].mxu0 %v402
        %v964 = vpop.f32.mrb[0].mxu0
        %v965 = vadd.f32 %v860, %v964
        %v966 = vpop.f32.mrb[0].mxu0
        %967 = vmatprep.mubr.f32.mxu0 %v410
        %968 = vmatmul.mubr.f32.gmra.mrb[0].mxu0 %v403
        %v969 = vpop.f32.mrb[0].mxu0
        %v970 = vadd.f32 %v865, %v969
        %v971 = vpop.f32.mrb[0].mxu0
        %972 = vmatprep.mubr.f32.mxu0 %v411
        %973 = vmatmul.mubr.f32.gmra.mrb[0].mxu0 %v404
        %v974 = vpop.f32.mrb[0].mxu0
        %v975 = vadd.f32 %v870, %v974
        %v976 = vpop.f32.mrb[0].mxu0
        %977 = vmatprep.mubr.f32.mxu0 %v412
        %978 = vmatmul.mubr.f32.gmra.mrb[0].mxu0 %v405
        %v979 = vpop.f32.mrb[0].mxu0
        %v980 = vadd.f32 %v875, %v979
        %v981 = vpop.f32.mrb[0].mxu0
        %982 = vmatprep.mubr.f32.mxu0 %v413
        %983 = vmatmul.mubr.f32.gmra.mrb[0].mxu0 %v406
        %v984 = vpop.f32.mrb[0].mxu0
        %v985 = vadd.f32 %v880, %v984
        %v986 = vpop.f32.mrb[0].mxu0
        %987 = vmatprep.mubr.f32.mxu0 %v431
        %988 = vmatmul.mubr.f32.gmra.mrb[0].mxu0 %v430
        %v989 = vpop.f32.mrb[0].mxu0
        %v990 = vadd.f32 %v885, %v989
        %v991 = vpop.f32.mrb[0].mxu0
        %992 = vmatprep.mubr.f32.mxu0 0.0
        %993 = vmatmul.mubr.f32.gmra.mrb[0].mxu0 0.0
        %v994 = vpop.f32.mrb[0].mxu0
        %v995 = vadd.f32 %v890, %v994
        %v996 = vpop.f32.mrb[0].mxu0
        %997 = vdwg.mxu0
        %998 = vmatprep.subr.mxu0 0.0
        %999 = vmatpush1.msra.mxu0 %v562
        %1000 = vmatprep.subr.mxu0 0.0
        %1001 = vmatpush1.msra.mxu0 %v563
        %1002 = vmatprep.subr.mxu0 0.0
        %1003 = vmatpush1.msra.mxu0 %v564
        %1004 = vmatprep.subr.mxu0 0.0
        %1005 = vmatpush1.msra.mxu0 %v565
        %1006 = vmatprep.subr.mxu0 0.0
        %1007 = vmatpush1.msra.mxu0 %v566
        %1008 = vmatprep.subr.mxu0 0.0
        %1009 = vmatpush1.msra.mxu0 %v567
        %1010 = vmatprep.subr.mxu0 0.0
        %1011 = vmatpush1.msra.mxu0 %v568
        %1012 = vmatprep.subr.mxu0 0.0
        %1013 = vmatpush1.msra.mxu0 %v569
        %1014 = vmatprep.subr.mxu0 0.0
        %1015 = vmatpush1.msra.mxu0 %v570
        %1016 = vmatprep.subr.mxu0 0.0
        %1017 = vmatpush1.msra.mxu0 %v571
        %1018 = vmatprep.subr.mxu0 0.0
        %1019 = vmatpush1.msra.mxu0 %v572
        %1020 = vmatprep.subr.mxu0 0.0
        %1021 = vmatpush1.msra.mxu0 %v573
        %1022 = vmatprep.subr.mxu0 0.0
        %1023 = vmatpush1.msra.mxu0 %v574
        %1024 = vmatprep.subr.mxu0 0.0
        %1025 = vmatpush1.msra.mxu0 %v575
        %1026 = vmatprep.subr.mxu0 0.0
        %1027 = vmatpush1.msra.mxu0 %v576
        %1028 = vmatprep.subr.mxu0 0.0
        %1029 = vmatpush1.msra.mxu0 %v577
        %1030 = vmatprep.subr.mxu0 0.0
        %1031 = vmatpush1.msra.mxu0 0.0
        %1032 = vmatprep.subr.mxu0 0.0
        %1033 = vmatpush1.msra.mxu0 0.0
        %1034 = vmatprep.subr.mxu0 0.0
        %1035 = vmatpush1.msra.mxu0 0.0
        %1036 = vmatprep.subr.mxu0 0.0
        %1037 = vmatpush1.msra.mxu0 0.0
        %1038 = vmatprep.subr.mxu0 0.0
        %1039 = vmatpush1.msra.mxu0 0.0
        %1040 = vmatprep.subr.mxu0 0.0
        %1041 = vmatpush1.msra.mxu0 0.0
        %1042 = vmatprep.subr.mxu0 0.0
        %1043 = vmatpush1.msra.mxu0 0.0
        %1044 = vmatprep.subr.mxu0 0.0
        %1045 = vmatpush1.msra.mxu0 0.0
        %1046 = vmatprep.subr.mxu0 0.0
        %1047 = vmatpush1.msra.mxu0 0.0
        %1048 = vmatprep.subr.mxu0 0.0
        %1049 = vmatpush1.msra.mxu0 0.0
        %1050 = vmatprep.subr.mxu0 0.0
        %1051 = vmatpush1.msra.mxu0 0.0
        %1052 = vmatprep.subr.mxu0 0.0
        %1053 = vmatpush1.msra.mxu0 0.0
        %1054 = vmatprep.subr.mxu0 0.0
        %1055 = vmatpush1.msra.mxu0 0.0
        %1056 = vmatprep.subr.mxu0 0.0
        %1057 = vmatpush1.msra.mxu0 0.0
        %1058 = vmatprep.subr.mxu0 0.0
        %1059 = vmatpush1.msra.mxu0 0.0
        %1060 = vmatprep.subr.mxu0 0.0
        %1061 = vmatpush1.msra.mxu0 0.0
        %1062 = vmatprep.mubr.f32.mxu0 0.0
        %1063 = vmatmul.mubr.f32.gmra.mrb[0].mxu0 %v423
        %v1064 = vpop.f32.mrb[0].mxu0
        %v1065 = vadd.f32 %v960, %v1064
        %v1066 = vpop.f32.mrb[0].mxu0
        %1067 = vmatprep.mubr.f32.mxu0 0.0
        %1068 = vmatmul.mubr.f32.gmra.mrb[0].mxu0 %v424
        %v1069 = vpop.f32.mrb[0].mxu0
        %v1070 = vadd.f32 %v965, %v1069
        %v1071 = vpop.f32.mrb[0].mxu0
        %1072 = vmatprep.mubr.f32.mxu0 0.0
        %1073 = vmatmul.mubr.f32.gmra.mrb[0].mxu0 %v425
        %v1074 = vpop.f32.mrb[0].mxu0
        %v1075 = vadd.f32 %v970, %v1074
        %v1076 = vpop.f32.mrb[0].mxu0
        %1077 = vmatprep.mubr.f32.mxu0 0.0
        %1078 = vmatmul.mubr.f32.gmra.mrb[0].mxu0 %v426
        %v1079 = vpop.f32.mrb[0].mxu0
        %v1080 = vadd.f32 %v975, %v1079
        %v1081 = vpop.f32.mrb[0].mxu0
        %1082 = vmatprep.mubr.f32.mxu0 0.0
        %1083 = vmatmul.mubr.f32.gmra.mrb[0].mxu0 %v427
        %v1084 = vpop.f32.mrb[0].mxu0
        %v1085 = vadd.f32 %v980, %v1084
        %v1086 = vpop.f32.mrb[0].mxu0
        %1087 = vmatprep.mubr.f32.mxu0 0.0
        %1088 = vmatmul.mubr.f32.gmra.mrb[0].mxu0 %v428
        %v1089 = vpop.f32.mrb[0].mxu0
        %v1090 = vadd.f32 %v985, %v1089
        %v1091 = vpop.f32.mrb[0].mxu0
        %1092 = vmatprep.mubr.f32.mxu0 0.0
        %1093 = vmatmul.mubr.f32.gmra.mrb[0].mxu0 %v433
        %v1094 = vpop.f32.mrb[0].mxu0
        %v1095 = vadd.f32 %v990, %v1094
        %v1096 = vpop.f32.mrb[0].mxu0
        %1097 = vmatprep.mubr.f32.mxu0 0.0
        %1098 = vmatmul.mubr.f32.gmra.mrb[0].mxu0 0.0
        %v1099 = vpop.f32.mrb[0].mxu0
        %v1100 = vadd.f32 %v995, %v1099
        %v1101 = vpop.f32.mrb[0].mxu0
        %1102 = vdwg.mxu0
        %v1103 = vld [vmem:[%s2] sm:$0x1]
        %v1105 = vlaneseq
        %v1106 = vshrl.u32 %v1105, 7
        %v1107 = vsub.s32 0, %v1106
        %v1108 = vrot.slane %v1103, %v1107
        %v1110 = vmul.f32 %v1065, %v1108
        %v1111 = vmul.f32 %v1070, %v1108
        %v1112 = vmul.f32 %v1075, %v1108
        %v1113 = vmul.f32 %v1080, %v1108
        %v1114 = vmul.f32 %v1085, %v1108
        %v1115 = vmul.f32 %v1090, %v1108
        %v1116 = vmul.f32 %v1095, %v1108
        %v1117 = vmul.f32 %v1100, %v1108
        %v1118 = vld [vmem:[%s3] sm:$0x1]
        %v1120 = vlaneseq
        %v1121 = vshrl.u32 %v1120, 7
        %v1122 = vsub.s32 0, %v1121
        %v1123 = vrot.slane %v1118, %v1122
        %v1125 = vadd.f32 %v1110, %v1123
        %v1126 = vadd.f32 %v1111, %v1123
        %v1127 = vadd.f32 %v1112, %v1123
        %v1128 = vadd.f32 %v1113, %v1123
        %v1129 = vadd.f32 %v1114, %v1123
        %v1130 = vadd.f32 %v1115, %v1123
        %v1131 = vadd.f32 %v1116, %v1123
        %v1132 = vadd.f32 %v1117, %v1123
        %v1133 = vmax.f32 %v1125, 0.0
        %v1134 = vmax.f32 %v1126, 0.0
        %v1135 = vmax.f32 %v1127, 0.0
        %v1136 = vmax.f32 %v1128, 0.0
        %v1137 = vmax.f32 %v1129, 0.0
        %v1138 = vmax.f32 %v1130, 0.0
        %v1139 = vmax.f32 %v1131, 0.0
        %v1140 = vmax.f32 %v1132, 0.0
        %1141 = vst [vmem:[#allocation3 + $0x10] sm:$0xff] %v1133
        %1142 = vst [vmem:[#allocation3 + $0x18] sm:$0xff] %v1134
        %1143 = vst [vmem:[#allocation3 + $0x20] sm:$0xff] %v1135
        %1144 = vst [vmem:[#allocation3 + $0x28] sm:$0xff] %v1136
        %1145 = vst [vmem:[#allocation3 + $0x30] sm:$0xff] %v1137
        %1146 = vst [vmem:[#allocation3 + $0x38] sm:$0xff] %v1138
        %1147 = vst [vmem:[#allocation3 + $0x40] sm:$0xff] %v1139
        %1148 = vst [vmem:[#allocation3 + $0x48] sm:$0xff] %v1140
        %v1149 = vld [vmem:[#allocation3 + $0xf] sm:$0xff]
        %v1150 = vld [vmem:[#allocation3 + $0x17] sm:$0xff]
        %v1151 = vld [vmem:[#allocation3 + $0x1f] sm:$0xff]
        %v1152 = vld [vmem:[#allocation3 + $0x27] sm:$0xff]
        %v1153 = vld [vmem:[#allocation3 + $0x2f] sm:$0xff]
        %v1154 = vld [vmem:[#allocation3 + $0x37] sm:$0xff]
        %v1155 = vld [vmem:[#allocation3 + $0x3f] sm:$0xff]
        %v1156 = vsel %vm399, %v1149, 0.0
        %v1157 = vsel %vm399, %v1150, 0.0
        %v1158 = vsel %vm399, %v1151, 0.0
        %v1159 = vsel %vm399, %v1152, 0.0
        %v1160 = vsel %vm399, %v1153, 0.0
        %v1161 = vsel %vm399, %v1154, 0.0
        %v1162 = vsel %vm399, %v1155, 0.0
        %v1163 = vld [vmem:[#allocation3 + $0x10] sm:$0xff]
        %v1164 = vld [vmem:[#allocation3 + $0x18] sm:$0xff]
        %v1165 = vld [vmem:[#allocation3 + $0x20] sm:$0xff]
        %v1166 = vld [vmem:[#allocation3 + $0x28] sm:$0xff]
        %v1167 = vld [vmem:[#allocation3 + $0x30] sm:$0xff]
        %v1168 = vld [vmem:[#allocation3 + $0x38] sm:$0xff]
        %v1169 = vld [vmem:[#allocation3 + $0x40] sm:$0xff]
        %v1170 = vld [vmem:[#allocation3 + $0x11] sm:$0xff]
        %v1171 = vld [vmem:[#allocation3 + $0x19] sm:$0xff]
        %v1172 = vld [vmem:[#allocation3 + $0x21] sm:$0xff]
        %v1173 = vld [vmem:[#allocation3 + $0x29] sm:$0xff]
        %v1174 = vld [vmem:[#allocation3 + $0x31] sm:$0xff]
        %v1175 = vld [vmem:[#allocation3 + $0x39] sm:$0xff]
        %v1176 = vld [vmem:[#allocation3 + $0x41] sm:$0xff]
        %v1177 = vsel %vm421, %v1170, 0.0
        %v1178 = vsel %vm421, %v1171, 0.0
        %v1179 = vsel %vm421, %v1172, 0.0
        %v1180 = vsel %vm421, %v1173, 0.0
        %v1181 = vsel %vm421, %v1174, 0.0
        %v1182 = vsel %vm421, %v1175, 0.0
        %v1183 = vsel %vm421, %v1176, 0.0
        %v1184 = vld [vmem:[#allocation3 + $0x47] sm:$0xff]
        %v1185 = vsel %vm399, %v1184, 0.0
        %v1186 = vld [vmem:[#allocation3 + $0x48] sm:$0xff]
        %v1187 = vld [vmem:[#allocation3 + $0x49] sm:$0xff]
        %v1188 = vsel %vm421, %v1187, 0.0
        %v1189 = vld [vmem:[#allocation9] sm:$0xff]
        %v1190 = vld [vmem:[#allocation9 + $0x8] sm:$0xff]
        %v1191 = vld [vmem:[#allocation9 + $0x10] sm:$0xff]
        %v1192 = vld [vmem:[#allocation9 + $0x18] sm:$0xff]
        %v1193 = vld [vmem:[#allocation9 + $0x20] sm:$0xff]
        %v1194 = vld [vmem:[#allocation9 + $0x28] sm:$0xff]
        %v1195 = vld [vmem:[#allocation9 + $0x30] sm:$0xff]
        %v1196 = vld [vmem:[#allocation9 + $0x38] sm:$0xff]
        %v1197 = vld [vmem:[#allocation9 + $0x40] sm:$0xff]
        %v1198 = vld [vmem:[#allocation9 + $0x48] sm:$0xff]
        %v1199 = vld [vmem:[#allocation9 + $0x50] sm:$0xff]
        %v1200 = vld [vmem:[#allocation9 + $0x58] sm:$0xff]
        %v1201 = vld [vmem:[#allocation9 + $0x60] sm:$0xff]
        %v1202 = vld [vmem:[#allocation9 + $0x68] sm:$0xff]
        %v1203 = vld [vmem:[#allocation9 + $0x70] sm:$0xff]
        %v1204 = vld [vmem:[#allocation9 + $0x78] sm:$0xff]
        %v1205 = vld [vmem:[#allocation9 + $0x80] sm:$0xff]
        %v1206 = vld [vmem:[#allocation9 + $0x88] sm:$0xff]
        %v1207 = vld [vmem:[#allocation9 + $0x90] sm:$0xff]
        %v1208 = vld [vmem:[#allocation9 + $0x98] sm:$0xff]
        %v1209 = vld [vmem:[#allocation9 + $0xa0] sm:$0xff]
        %v1210 = vld [vmem:[#allocation9 + $0xa8] sm:$0xff]
        %v1211 = vld [vmem:[#allocation9 + $0xb0] sm:$0xff]
        %v1212 = vld [vmem:[#allocation9 + $0xb8] sm:$0xff]
        %v1213 = vld [vmem:[#allocation9 + $0xc0] sm:$0xff]
        %v1214 = vld [vmem:[#allocation9 + $0xc8] sm:$0xff]
        %v1215 = vld [vmem:[#allocation9 + $0xd0] sm:$0xff]
        %v1216 = vld [vmem:[#allocation9 + $0xd8] sm:$0xff]
        %v1217 = vld [vmem:[#allocation9 + $0xe0] sm:$0xff]
        %v1218 = vld [vmem:[#allocation9 + $0xe8] sm:$0xff]
        %v1219 = vld [vmem:[#allocation9 + $0xf0] sm:$0xff]
        %v1220 = vld [vmem:[#allocation9 + $0xf8] sm:$0xff]
        %v1221 = vld [vmem:[#allocation9 + $0x100] sm:$0xff]
        %v1222 = vld [vmem:[#allocation9 + $0x108] sm:$0xff]
        %v1223 = vld [vmem:[#allocation9 + $0x110] sm:$0xff]
        %v1224 = vld [vmem:[#allocation9 + $0x118] sm:$0xff]
        %v1225 = vld [vmem:[#allocation9 + $0x120] sm:$0xff]
        %v1226 = vld [vmem:[#allocation9 + $0x128] sm:$0xff]
        %v1227 = vld [vmem:[#allocation9 + $0x130] sm:$0xff]
        %v1228 = vld [vmem:[#allocation9 + $0x138] sm:$0xff]
        %v1229 = vld [vmem:[#allocation9 + $0x140] sm:$0xff]
        %v1230 = vld [vmem:[#allocation9 + $0x148] sm:$0xff]
        %v1231 = vld [vmem:[#allocation9 + $0x150] sm:$0xff]
        %v1232 = vld [vmem:[#allocation9 + $0x158] sm:$0xff]
        %v1233 = vld [vmem:[#allocation9 + $0x160] sm:$0xff]
        %v1234 = vld [vmem:[#allocation9 + $0x168] sm:$0xff]
        %v1235 = vld [vmem:[#allocation9 + $0x170] sm:$0xff]
        %v1236 = vld [vmem:[#allocation9 + $0x178] sm:$0xff]
        %v1237 = vld [vmem:[#allocation9 + $0x180] sm:$0xff]
        %v1238 = vld [vmem:[#allocation9 + $0x188] sm:$0xff]
        %v1239 = vld [vmem:[#allocation9 + $0x190] sm:$0xff]
        %v1240 = vld [vmem:[#allocation9 + $0x198] sm:$0xff]
        %v1241 = vld [vmem:[#allocation9 + $0x1a0] sm:$0xff]
        %v1242 = vld [vmem:[#allocation9 + $0x1a8] sm:$0xff]
        %v1243 = vld [vmem:[#allocation9 + $0x1b0] sm:$0xff]
        %v1244 = vld [vmem:[#allocation9 + $0x1b8] sm:$0xff]
        %v1245 = vld [vmem:[#allocation9 + $0x1c0] sm:$0xff]
        %v1246 = vld [vmem:[#allocation9 + $0x1c8] sm:$0xff]
        %v1247 = vld [vmem:[#allocation9 + $0x1d0] sm:$0xff]
        %v1248 = vld [vmem:[#allocation9 + $0x1d8] sm:$0xff]
        %v1249 = vld [vmem:[#allocation9 + $0x1e0] sm:$0xff]
        %v1250 = vld [vmem:[#allocation9 + $0x1e8] sm:$0xff]
        %v1251 = vld [vmem:[#allocation9 + $0x1f0] sm:$0xff]
        %v1252 = vld [vmem:[#allocation9 + $0x1f8] sm:$0xff]
        %v1253 = vld [vmem:[#allocation9 + $0x200] sm:$0xff]
        %v1254 = vld [vmem:[#allocation9 + $0x208] sm:$0xff]
        %v1255 = vld [vmem:[#allocation9 + $0x210] sm:$0xff]
        %v1256 = vld [vmem:[#allocation9 + $0x218] sm:$0xff]
        %v1257 = vld [vmem:[#allocation9 + $0x220] sm:$0xff]
        %v1258 = vld [vmem:[#allocation9 + $0x228] sm:$0xff]
        %v1259 = vld [vmem:[#allocation9 + $0x230] sm:$0xff]
        %v1260 = vld [vmem:[#allocation9 + $0x238] sm:$0xff]
        %v1261 = vld [vmem:[#allocation9 + $0x240] sm:$0xff]
        %v1262 = vld [vmem:[#allocation9 + $0x248] sm:$0xff]
        %v1263 = vld [vmem:[#allocation9 + $0x250] sm:$0xff]
        %v1264 = vld [vmem:[#allocation9 + $0x258] sm:$0xff]
        %v1265 = vld [vmem:[#allocation9 + $0x260] sm:$0xff]
        %v1266 = vld [vmem:[#allocation9 + $0x268] sm:$0xff]
        %v1267 = vld [vmem:[#allocation9 + $0x270] sm:$0xff]
        %v1268 = vld [vmem:[#allocation9 + $0x278] sm:$0xff]
        %v1269 = vld [vmem:[#allocation9 + $0x280] sm:$0xff]
        %v1270 = vld [vmem:[#allocation9 + $0x288] sm:$0xff]
        %v1271 = vld [vmem:[#allocation9 + $0x290] sm:$0xff]
        %v1272 = vld [vmem:[#allocation9 + $0x298] sm:$0xff]
        %v1273 = vld [vmem:[#allocation9 + $0x2a0] sm:$0xff]
        %v1274 = vld [vmem:[#allocation9 + $0x2a8] sm:$0xff]
        %v1275 = vld [vmem:[#allocation9 + $0x2b0] sm:$0xff]
        %v1276 = vld [vmem:[#allocation9 + $0x2b8] sm:$0xff]
        %v1277 = vld [vmem:[#allocation9 + $0x2c0] sm:$0xff]
        %v1278 = vld [vmem:[#allocation9 + $0x2c8] sm:$0xff]
        %v1279 = vld [vmem:[#allocation9 + $0x2d0] sm:$0xff]
        %v1280 = vld [vmem:[#allocation9 + $0x2d8] sm:$0xff]
        %v1281 = vld [vmem:[#allocation9 + $0x2e0] sm:$0xff]
        %v1282 = vld [vmem:[#allocation9 + $0x2e8] sm:$0xff]
        %v1283 = vld [vmem:[#allocation9 + $0x2f0] sm:$0xff]
        %v1284 = vld [vmem:[#allocation9 + $0x2f8] sm:$0xff]
        %v1285 = vld [vmem:[#allocation9 + $0x300] sm:$0xff]
        %v1286 = vld [vmem:[#allocation9 + $0x308] sm:$0xff]
        %v1287 = vld [vmem:[#allocation9 + $0x310] sm:$0xff]
        %v1288 = vld [vmem:[#allocation9 + $0x318] sm:$0xff]
        %v1289 = vld [vmem:[#allocation9 + $0x320] sm:$0xff]
        %v1290 = vld [vmem:[#allocation9 + $0x328] sm:$0xff]
        %v1291 = vld [vmem:[#allocation9 + $0x330] sm:$0xff]
        %v1292 = vld [vmem:[#allocation9 + $0x338] sm:$0xff]
        %v1293 = vld [vmem:[#allocation9 + $0x340] sm:$0xff]
        %v1294 = vld [vmem:[#allocation9 + $0x348] sm:$0xff]
        %v1295 = vld [vmem:[#allocation9 + $0x350] sm:$0xff]
        %v1296 = vld [vmem:[#allocation9 + $0x358] sm:$0xff]
        %v1297 = vld [vmem:[#allocation9 + $0x360] sm:$0xff]
        %v1298 = vld [vmem:[#allocation9 + $0x368] sm:$0xff]
        %v1299 = vld [vmem:[#allocation9 + $0x370] sm:$0xff]
        %v1300 = vld [vmem:[#allocation9 + $0x378] sm:$0xff]
        %v1301 = vld [vmem:[#allocation9 + $0x380] sm:$0xff]
        %v1302 = vld [vmem:[#allocation9 + $0x388] sm:$0xff]
        %v1303 = vld [vmem:[#allocation9 + $0x390] sm:$0xff]
        %v1304 = vld [vmem:[#allocation9 + $0x398] sm:$0xff]
        %v1305 = vld [vmem:[#allocation9 + $0x3a0] sm:$0xff]
        %v1306 = vld [vmem:[#allocation9 + $0x3a8] sm:$0xff]
        %v1307 = vld [vmem:[#allocation9 + $0x3b0] sm:$0xff]
        %v1308 = vld [vmem:[#allocation9 + $0x3b8] sm:$0xff]
        %v1309 = vld [vmem:[#allocation9 + $0x3c0] sm:$0xff]
        %v1310 = vld [vmem:[#allocation9 + $0x3c8] sm:$0xff]
        %v1311 = vld [vmem:[#allocation9 + $0x3d0] sm:$0xff]
        %v1312 = vld [vmem:[#allocation9 + $0x3d8] sm:$0xff]
        %v1313 = vld [vmem:[#allocation9 + $0x3e0] sm:$0xff]
        %v1314 = vld [vmem:[#allocation9 + $0x3e8] sm:$0xff]
        %v1315 = vld [vmem:[#allocation9 + $0x3f0] sm:$0xff]
        %v1316 = vld [vmem:[#allocation9 + $0x3f8] sm:$0xff]
        %v1317 = vld [vmem:[#allocation9 + $0x400] sm:$0xff]
        %v1318 = vld [vmem:[#allocation9 + $0x408] sm:$0xff]
        %v1319 = vld [vmem:[#allocation9 + $0x410] sm:$0xff]
        %v1320 = vld [vmem:[#allocation9 + $0x418] sm:$0xff]
        %v1321 = vld [vmem:[#allocation9 + $0x420] sm:$0xff]
        %v1322 = vld [vmem:[#allocation9 + $0x428] sm:$0xff]
        %v1323 = vld [vmem:[#allocation9 + $0x430] sm:$0xff]
        %v1324 = vld [vmem:[#allocation9 + $0x438] sm:$0xff]
        %v1325 = vld [vmem:[#allocation9 + $0x440] sm:$0xff]
        %v1326 = vld [vmem:[#allocation9 + $0x448] sm:$0xff]
        %v1327 = vld [vmem:[#allocation9 + $0x450] sm:$0xff]
        %v1328 = vld [vmem:[#allocation9 + $0x458] sm:$0xff]
        %v1329 = vld [vmem:[#allocation9 + $0x460] sm:$0xff]
        %v1330 = vld [vmem:[#allocation9 + $0x468] sm:$0xff]
        %v1331 = vld [vmem:[#allocation9 + $0x470] sm:$0xff]
        %v1332 = vld [vmem:[#allocation9 + $0x478] sm:$0xff]
        %1333 = vmatprep.subr.mxu0 0.0
        %1334 = vmatpush1.msra.mxu0 %v1189
        %1335 = vmatprep.subr.mxu0 0.0
        %1336 = vmatpush1.msra.mxu0 %v1190
        %1337 = vmatprep.subr.mxu0 0.0
        %1338 = vmatpush1.msra.mxu0 %v1191
        %1339 = vmatprep.subr.mxu0 0.0
        %1340 = vmatpush1.msra.mxu0 %v1192
        %1341 = vmatprep.subr.mxu0 0.0
        %1342 = vmatpush1.msra.mxu0 %v1193
        %1343 = vmatprep.subr.mxu0 0.0
        %1344 = vmatpush1.msra.mxu0 %v1194
        %1345 = vmatprep.subr.mxu0 0.0
        %1346 = vmatpush1.msra.mxu0 %v1195
        %1347 = vmatprep.subr.mxu0 0.0
        %1348 = vmatpush1.msra.mxu0 %v1196
        %1349 = vmatprep.subr.mxu0 0.0
        %1350 = vmatpush1.msra.mxu0 %v1197
        %1351 = vmatprep.subr.mxu0 0.0
        %1352 = vmatpush1.msra.mxu0 %v1198
        %1353 = vmatprep.subr.mxu0 0.0
        %1354 = vmatpush1.msra.mxu0 %v1199
        %1355 = vmatprep.subr.mxu0 0.0
        %1356 = vmatpush1.msra.mxu0 %v1200
        %1357 = vmatprep.subr.mxu0 0.0
        %1358 = vmatpush1.msra.mxu0 %v1201
        %1359 = vmatprep.subr.mxu0 0.0
        %1360 = vmatpush1.msra.mxu0 %v1202
        %1361 = vmatprep.subr.mxu0 0.0
        %1362 = vmatpush1.msra.mxu0 %v1203
        %1363 = vmatprep.subr.mxu0 0.0
        %1364 = vmatpush1.msra.mxu0 %v1204
        %1365 = vmatprep.subr.mxu0 0.0
        %1366 = vmatpush1.msra.mxu0 %v1205
        %1367 = vmatprep.subr.mxu0 0.0
        %1368 = vmatpush1.msra.mxu0 %v1206
        %1369 = vmatprep.subr.mxu0 0.0
        %1370 = vmatpush1.msra.mxu0 %v1207
        %1371 = vmatprep.subr.mxu0 0.0
        %1372 = vmatpush1.msra.mxu0 %v1208
        %1373 = vmatprep.subr.mxu0 0.0
        %1374 = vmatpush1.msra.mxu0 %v1209
        %1375 = vmatprep.subr.mxu0 0.0
        %1376 = vmatpush1.msra.mxu0 %v1210
        %1377 = vmatprep.subr.mxu0 0.0
        %1378 = vmatpush1.msra.mxu0 %v1211
        %1379 = vmatprep.subr.mxu0 0.0
        %1380 = vmatpush1.msra.mxu0 %v1212
        %1381 = vmatprep.subr.mxu0 0.0
        %1382 = vmatpush1.msra.mxu0 %v1213
        %1383 = vmatprep.subr.mxu0 0.0
        %1384 = vmatpush1.msra.mxu0 %v1214
        %1385 = vmatprep.subr.mxu0 0.0
        %1386 = vmatpush1.msra.mxu0 %v1215
        %1387 = vmatprep.subr.mxu0 0.0
        %1388 = vmatpush1.msra.mxu0 %v1216
        %1389 = vmatprep.subr.mxu0 0.0
        %1390 = vmatpush1.msra.mxu0 %v1217
        %1391 = vmatprep.subr.mxu0 0.0
        %1392 = vmatpush1.msra.mxu0 %v1218
        %1393 = vmatprep.subr.mxu0 0.0
        %1394 = vmatpush1.msra.mxu0 %v1219
        %1395 = vmatprep.subr.mxu0 0.0
        %1396 = vmatpush1.msra.mxu0 %v1220
        %1397 = vmatprep.mubr.f32.mxu0 0.0
        %1398 = vmatmul.mubr.f32.gmra.mrb[0].mxu0 0.0
        %v1399 = vpop.f32.mrb[0].mxu0
        %v1400 = vadd.f32 0.0, %v1399
        %v1401 = vpop.f32.mrb[0].mxu0
        %1402 = vmatprep.mubr.f32.mxu0 %v1163
        %1403 = vmatmul.mubr.f32.gmra.mrb[0].mxu0 %v1156
        %v1404 = vpop.f32.mrb[0].mxu0
        %v1405 = vadd.f32 0.0, %v1404
        %v1406 = vpop.f32.mrb[0].mxu0
        %1407 = vmatprep.mubr.f32.mxu0 %v1164
        %1408 = vmatmul.mubr.f32.gmra.mrb[0].mxu0 %v1157
        %v1409 = vpop.f32.mrb[0].mxu0
        %v1410 = vadd.f32 0.0, %v1409
        %v1411 = vpop.f32.mrb[0].mxu0
        %1412 = vmatprep.mubr.f32.mxu0 %v1165
        %1413 = vmatmul.mubr.f32.gmra.mrb[0].mxu0 %v1158
        %v1414 = vpop.f32.mrb[0].mxu0
        %v1415 = vadd.f32 0.0, %v1414
        %v1416 = vpop.f32.mrb[0].mxu0
        %1417 = vmatprep.mubr.f32.mxu0 %v1166
        %1418 = vmatmul.mubr.f32.gmra.mrb[0].mxu0 %v1159
        %v1419 = vpop.f32.mrb[0].mxu0
        %v1420 = vadd.f32 0.0, %v1419
        %v1421 = vpop.f32.mrb[0].mxu0
        %1422 = vmatprep.mubr.f32.mxu0 %v1167
        %1423 = vmatmul.mubr.f32.gmra.mrb[0].mxu0 %v1160
        %v1424 = vpop.f32.mrb[0].mxu0
        %v1425 = vadd.f32 0.0, %v1424
        %v1426 = vpop.f32.mrb[0].mxu0
        %1427 = vmatprep.mubr.f32.mxu0 %v1168
        %1428 = vmatmul.mubr.f32.gmra.mrb[0].mxu0 %v1161
        %v1429 = vpop.f32.mrb[0].mxu0
        %v1430 = vadd.f32 0.0, %v1429
        %v1431 = vpop.f32.mrb[0].mxu0
        %1432 = vmatprep.mubr.f32.mxu0 %v1169
        %1433 = vmatmul.mubr.f32.gmra.mrb[0].mxu0 %v1162
        %v1434 = vpop.f32.mrb[0].mxu0
        %v1435 = vadd.f32 0.0, %v1434
        %v1436 = vpop.f32.mrb[0].mxu0
        %1437 = vdwg.mxu0
        %1438 = vmatprep.subr.mxu0 0.0
        %1439 = vmatpush1.msra.mxu0 %v1221
        %1440 = vmatprep.subr.mxu0 0.0
        %1441 = vmatpush1.msra.mxu0 %v1222
        %1442 = vmatprep.subr.mxu0 0.0
        %1443 = vmatpush1.msra.mxu0 %v1223
        %1444 = vmatprep.subr.mxu0 0.0
        %1445 = vmatpush1.msra.mxu0 %v1224
        %1446 = vmatprep.subr.mxu0 0.0
        %1447 = vmatpush1.msra.mxu0 %v1225
        %1448 = vmatprep.subr.mxu0 0.0
        %1449 = vmatpush1.msra.mxu0 %v1226
        %1450 = vmatprep.subr.mxu0 0.0
        %1451 = vmatpush1.msra.mxu0 %v1227
        %1452 = vmatprep.subr.mxu0 0.0
        %1453 = vmatpush1.msra.mxu0 %v1228
        %1454 = vmatprep.subr.mxu0 0.0
        %1455 = vmatpush1.msra.mxu0 %v1229
        %1456 = vmatprep.subr.mxu0 0.0
        %1457 = vmatpush1.msra.mxu0 %v1230
        %1458 = vmatprep.subr.mxu0 0.0
        %1459 = vmatpush1.msra.mxu0 %v1231
        %1460 = vmatprep.subr.mxu0 0.0
        %1461 = vmatpush1.msra.mxu0 %v1232
        %1462 = vmatprep.subr.mxu0 0.0
        %1463 = vmatpush1.msra.mxu0 %v1233
        %1464 = vmatprep.subr.mxu0 0.0
        %1465 = vmatpush1.msra.mxu0 %v1234
        %1466 = vmatprep.subr.mxu0 0.0
        %1467 = vmatpush1.msra.mxu0 %v1235
        %1468 = vmatprep.subr.mxu0 0.0
        %1469 = vmatpush1.msra.mxu0 %v1236
        %1470 = vmatprep.subr.mxu0 0.0
        %1471 = vmatpush1.msra.mxu0 %v1237
        %1472 = vmatprep.subr.mxu0 0.0
        %1473 = vmatpush1.msra.mxu0 %v1238
        %1474 = vmatprep.subr.mxu0 0.0
        %1475 = vmatpush1.msra.mxu0 %v1239
        %1476 = vmatprep.subr.mxu0 0.0
        %1477 = vmatpush1.msra.mxu0 %v1240
        %1478 = vmatprep.subr.mxu0 0.0
        %1479 = vmatpush1.msra.mxu0 %v1241
        %1480 = vmatprep.subr.mxu0 0.0
        %1481 = vmatpush1.msra.mxu0 %v1242
        %1482 = vmatprep.subr.mxu0 0.0
        %1483 = vmatpush1.msra.mxu0 %v1243
        %1484 = vmatprep.subr.mxu0 0.0
        %1485 = vmatpush1.msra.mxu0 %v1244
        %1486 = vmatprep.subr.mxu0 0.0
        %1487 = vmatpush1.msra.mxu0 %v1245
        %1488 = vmatprep.subr.mxu0 0.0
        %1489 = vmatpush1.msra.mxu0 %v1246
        %1490 = vmatprep.subr.mxu0 0.0
        %1491 = vmatpush1.msra.mxu0 %v1247
        %1492 = vmatprep.subr.mxu0 0.0
        %1493 = vmatpush1.msra.mxu0 %v1248
        %1494 = vmatprep.subr.mxu0 0.0
        %1495 = vmatpush1.msra.mxu0 %v1249
        %1496 = vmatprep.subr.mxu0 0.0
        %1497 = vmatpush1.msra.mxu0 %v1250
        %1498 = vmatprep.subr.mxu0 0.0
        %1499 = vmatpush1.msra.mxu0 %v1251
        %1500 = vmatprep.subr.mxu0 0.0
        %1501 = vmatpush1.msra.mxu0 %v1252
        %1502 = vmatprep.mubr.f32.mxu0 %v1156
        %1503 = vmatmul.mubr.f32.gmra.mrb[0].mxu0 0.0
        %v1504 = vpop.f32.mrb[0].mxu0
        %v1505 = vadd.f32 %v1400, %v1504
        %v1506 = vpop.f32.mrb[0].mxu0
        %1507 = vmatprep.mubr.f32.mxu0 %v1157
        %1508 = vmatmul.mubr.f32.gmra.mrb[0].mxu0 %v1177
        %v1509 = vpop.f32.mrb[0].mxu0
        %v1510 = vadd.f32 %v1405, %v1509
        %v1511 = vpop.f32.mrb[0].mxu0
        %1512 = vmatprep.mubr.f32.mxu0 %v1158
        %1513 = vmatmul.mubr.f32.gmra.mrb[0].mxu0 %v1178
        %v1514 = vpop.f32.mrb[0].mxu0
        %v1515 = vadd.f32 %v1410, %v1514
        %v1516 = vpop.f32.mrb[0].mxu0
        %1517 = vmatprep.mubr.f32.mxu0 %v1159
        %1518 = vmatmul.mubr.f32.gmra.mrb[0].mxu0 %v1179
        %v1519 = vpop.f32.mrb[0].mxu0
        %v1520 = vadd.f32 %v1415, %v1519
        %v1521 = vpop.f32.mrb[0].mxu0
        %1522 = vmatprep.mubr.f32.mxu0 %v1160
        %1523 = vmatmul.mubr.f32.gmra.mrb[0].mxu0 %v1180
        %v1524 = vpop.f32.mrb[0].mxu0
        %v1525 = vadd.f32 %v1420, %v1524
        %v1526 = vpop.f32.mrb[0].mxu0
        %1527 = vmatprep.mubr.f32.mxu0 %v1161
        %1528 = vmatmul.mubr.f32.gmra.mrb[0].mxu0 %v1181
        %v1529 = vpop.f32.mrb[0].mxu0
        %v1530 = vadd.f32 %v1425, %v1529
        %v1531 = vpop.f32.mrb[0].mxu0
        %1532 = vmatprep.mubr.f32.mxu0 %v1162
        %1533 = vmatmul.mubr.f32.gmra.mrb[0].mxu0 %v1182
        %v1534 = vpop.f32.mrb[0].mxu0
        %v1535 = vadd.f32 %v1430, %v1534
        %v1536 = vpop.f32.mrb[0].mxu0
        %1537 = vmatprep.mubr.f32.mxu0 %v1185
        %1538 = vmatmul.mubr.f32.gmra.mrb[0].mxu0 %v1183
        %v1539 = vpop.f32.mrb[0].mxu0
        %v1540 = vadd.f32 %v1435, %v1539
        %v1541 = vpop.f32.mrb[0].mxu0
        %1542 = vdwg.mxu0
        %1543 = vmatprep.subr.mxu0 0.0
        %1544 = vmatpush1.msra.mxu0 %v1253
        %1545 = vmatprep.subr.mxu0 0.0
        %1546 = vmatpush1.msra.mxu0 %v1254
        %1547 = vmatprep.subr.mxu0 0.0
        %1548 = vmatpush1.msra.mxu0 %v1255
        %1549 = vmatprep.subr.mxu0 0.0
        %1550 = vmatpush1.msra.mxu0 %v1256
        %1551 = vmatprep.subr.mxu0 0.0
        %1552 = vmatpush1.msra.mxu0 %v1257
        %1553 = vmatprep.subr.mxu0 0.0
        %1554 = vmatpush1.msra.mxu0 %v1258
        %1555 = vmatprep.subr.mxu0 0.0
        %1556 = vmatpush1.msra.mxu0 %v1259
        %1557 = vmatprep.subr.mxu0 0.0
        %1558 = vmatpush1.msra.mxu0 %v1260
        %1559 = vmatprep.subr.mxu0 0.0
        %1560 = vmatpush1.msra.mxu0 %v1261
        %1561 = vmatprep.subr.mxu0 0.0
        %1562 = vmatpush1.msra.mxu0 %v1262
        %1563 = vmatprep.subr.mxu0 0.0
        %1564 = vmatpush1.msra.mxu0 %v1263
        %1565 = vmatprep.subr.mxu0 0.0
        %1566 = vmatpush1.msra.mxu0 %v1264
        %1567 = vmatprep.subr.mxu0 0.0
        %1568 = vmatpush1.msra.mxu0 %v1265
        %1569 = vmatprep.subr.mxu0 0.0
        %1570 = vmatpush1.msra.mxu0 %v1266
        %1571 = vmatprep.subr.mxu0 0.0
        %1572 = vmatpush1.msra.mxu0 %v1267
        %1573 = vmatprep.subr.mxu0 0.0
        %1574 = vmatpush1.msra.mxu0 %v1268
        %1575 = vmatprep.subr.mxu0 0.0
        %1576 = vmatpush1.msra.mxu0 %v1269
        %1577 = vmatprep.subr.mxu0 0.0
        %1578 = vmatpush1.msra.mxu0 %v1270
        %1579 = vmatprep.subr.mxu0 0.0
        %1580 = vmatpush1.msra.mxu0 %v1271
        %1581 = vmatprep.subr.mxu0 0.0
        %1582 = vmatpush1.msra.mxu0 %v1272
        %1583 = vmatprep.subr.mxu0 0.0
        %1584 = vmatpush1.msra.mxu0 %v1273
        %1585 = vmatprep.subr.mxu0 0.0
        %1586 = vmatpush1.msra.mxu0 %v1274
        %1587 = vmatprep.subr.mxu0 0.0
        %1588 = vmatpush1.msra.mxu0 %v1275
        %1589 = vmatprep.subr.mxu0 0.0
        %1590 = vmatpush1.msra.mxu0 %v1276
        %1591 = vmatprep.subr.mxu0 0.0
        %1592 = vmatpush1.msra.mxu0 %v1277
        %1593 = vmatprep.subr.mxu0 0.0
        %1594 = vmatpush1.msra.mxu0 %v1278
        %1595 = vmatprep.subr.mxu0 0.0
        %1596 = vmatpush1.msra.mxu0 %v1279
        %1597 = vmatprep.subr.mxu0 0.0
        %1598 = vmatpush1.msra.mxu0 %v1280
        %1599 = vmatprep.subr.mxu0 0.0
        %1600 = vmatpush1.msra.mxu0 %v1281
        %1601 = vmatprep.subr.mxu0 0.0
        %1602 = vmatpush1.msra.mxu0 %v1282
        %1603 = vmatprep.subr.mxu0 0.0
        %1604 = vmatpush1.msra.mxu0 %v1283
        %1605 = vmatprep.subr.mxu0 0.0
        %1606 = vmatpush1.msra.mxu0 %v1284
        %1607 = vmatprep.mubr.f32.mxu0 %v1177
        %1608 = vmatmul.mubr.f32.gmra.mrb[0].mxu0 %v1163
        %v1609 = vpop.f32.mrb[0].mxu0
        %v1610 = vadd.f32 %v1505, %v1609
        %v1611 = vpop.f32.mrb[0].mxu0
        %1612 = vmatprep.mubr.f32.mxu0 %v1178
        %1613 = vmatmul.mubr.f32.gmra.mrb[0].mxu0 %v1164
        %v1614 = vpop.f32.mrb[0].mxu0
        %v1615 = vadd.f32 %v1510, %v1614
        %v1616 = vpop.f32.mrb[0].mxu0
        %1617 = vmatprep.mubr.f32.mxu0 %v1179
        %1618 = vmatmul.mubr.f32.gmra.mrb[0].mxu0 %v1165
        %v1619 = vpop.f32.mrb[0].mxu0
        %v1620 = vadd.f32 %v1515, %v1619
        %v1621 = vpop.f32.mrb[0].mxu0
        %1622 = vmatprep.mubr.f32.mxu0 %v1180
        %1623 = vmatmul.mubr.f32.gmra.mrb[0].mxu0 %v1166
        %v1624 = vpop.f32.mrb[0].mxu0
        %v1625 = vadd.f32 %v1520, %v1624
        %v1626 = vpop.f32.mrb[0].mxu0
        %1627 = vmatprep.mubr.f32.mxu0 %v1181
        %1628 = vmatmul.mubr.f32.gmra.mrb[0].mxu0 %v1167
        %v1629 = vpop.f32.mrb[0].mxu0
        %v1630 = vadd.f32 %v1525, %v1629
        %v1631 = vpop.f32.mrb[0].mxu0
        %1632 = vmatprep.mubr.f32.mxu0 %v1182
        %1633 = vmatmul.mubr.f32.gmra.mrb[0].mxu0 %v1168
        %v1634 = vpop.f32.mrb[0].mxu0
        %v1635 = vadd.f32 %v1530, %v1634
        %v1636 = vpop.f32.mrb[0].mxu0
        %1637 = vmatprep.mubr.f32.mxu0 %v1183
        %1638 = vmatmul.mubr.f32.gmra.mrb[0].mxu0 %v1169
        %v1639 = vpop.f32.mrb[0].mxu0
        %v1640 = vadd.f32 %v1535, %v1639
        %v1641 = vpop.f32.mrb[0].mxu0
        %1642 = vmatprep.mubr.f32.mxu0 %v1188
        %1643 = vmatmul.mubr.f32.gmra.mrb[0].mxu0 %v1186
        %v1644 = vpop.f32.mrb[0].mxu0
        %v1645 = vadd.f32 %v1540, %v1644
        %v1646 = vpop.f32.mrb[0].mxu0
        %1647 = vdwg.mxu0
        %1648 = vmatprep.subr.mxu0 0.0
        %1649 = vmatpush1.msra.mxu0 %v1285
        %1650 = vmatprep.subr.mxu0 0.0
        %1651 = vmatpush1.msra.mxu0 %v1286
        %1652 = vmatprep.subr.mxu0 0.0
        %1653 = vmatpush1.msra.mxu0 %v1287
        %1654 = vmatprep.subr.mxu0 0.0
        %1655 = vmatpush1.msra.mxu0 %v1288
        %1656 = vmatprep.subr.mxu0 0.0
        %1657 = vmatpush1.msra.mxu0 %v1289
        %1658 = vmatprep.subr.mxu0 0.0
        %1659 = vmatpush1.msra.mxu0 %v1290
        %1660 = vmatprep.subr.mxu0 0.0
        %1661 = vmatpush1.msra.mxu0 %v1291
        %1662 = vmatprep.subr.mxu0 0.0
        %1663 = vmatpush1.msra.mxu0 %v1292
        %1664 = vmatprep.subr.mxu0 0.0
        %1665 = vmatpush1.msra.mxu0 %v1293
        %1666 = vmatprep.subr.mxu0 0.0
        %1667 = vmatpush1.msra.mxu0 %v1294
        %1668 = vmatprep.subr.mxu0 0.0
        %1669 = vmatpush1.msra.mxu0 %v1295
        %1670 = vmatprep.subr.mxu0 0.0
        %1671 = vmatpush1.msra.mxu0 %v1296
        %1672 = vmatprep.subr.mxu0 0.0
        %1673 = vmatpush1.msra.mxu0 %v1297
        %1674 = vmatprep.subr.mxu0 0.0
        %1675 = vmatpush1.msra.mxu0 %v1298
        %1676 = vmatprep.subr.mxu0 0.0
        %1677 = vmatpush1.msra.mxu0 %v1299
        %1678 = vmatprep.subr.mxu0 0.0
        %1679 = vmatpush1.msra.mxu0 %v1300
        %1680 = vmatprep.subr.mxu0 0.0
        %1681 = vmatpush1.msra.mxu0 %v1301
        %1682 = vmatprep.subr.mxu0 0.0
        %1683 = vmatpush1.msra.mxu0 %v1302
        %1684 = vmatprep.subr.mxu0 0.0
        %1685 = vmatpush1.msra.mxu0 %v1303
        %1686 = vmatprep.subr.mxu0 0.0
        %1687 = vmatpush1.msra.mxu0 %v1304
        %1688 = vmatprep.subr.mxu0 0.0
        %1689 = vmatpush1.msra.mxu0 %v1305
        %1690 = vmatprep.subr.mxu0 0.0
        %1691 = vmatpush1.msra.mxu0 %v1306
        %1692 = vmatprep.subr.mxu0 0.0
        %1693 = vmatpush1.msra.mxu0 %v1307
        %1694 = vmatprep.subr.mxu0 0.0
        %1695 = vmatpush1.msra.mxu0 %v1308
        %1696 = vmatprep.subr.mxu0 0.0
        %1697 = vmatpush1.msra.mxu0 %v1309
        %1698 = vmatprep.subr.mxu0 0.0
        %1699 = vmatpush1.msra.mxu0 %v1310
        %1700 = vmatprep.subr.mxu0 0.0
        %1701 = vmatpush1.msra.mxu0 %v1311
        %1702 = vmatprep.subr.mxu0 0.0
        %1703 = vmatpush1.msra.mxu0 %v1312
        %1704 = vmatprep.subr.mxu0 0.0
        %1705 = vmatpush1.msra.mxu0 %v1313
        %1706 = vmatprep.subr.mxu0 0.0
        %1707 = vmatpush1.msra.mxu0 %v1314
        %1708 = vmatprep.subr.mxu0 0.0
        %1709 = vmatpush1.msra.mxu0 %v1315
        %1710 = vmatprep.subr.mxu0 0.0
        %1711 = vmatpush1.msra.mxu0 %v1316
        %1712 = vmatprep.mubr.f32.mxu0 %v1164
        %1713 = vmatmul.mubr.f32.gmra.mrb[0].mxu0 %v1157
        %v1714 = vpop.f32.mrb[0].mxu0
        %v1715 = vadd.f32 %v1610, %v1714
        %v1716 = vpop.f32.mrb[0].mxu0
        %1717 = vmatprep.mubr.f32.mxu0 %v1165
        %1718 = vmatmul.mubr.f32.gmra.mrb[0].mxu0 %v1158
        %v1719 = vpop.f32.mrb[0].mxu0
        %v1720 = vadd.f32 %v1615, %v1719
        %v1721 = vpop.f32.mrb[0].mxu0
        %1722 = vmatprep.mubr.f32.mxu0 %v1166
        %1723 = vmatmul.mubr.f32.gmra.mrb[0].mxu0 %v1159
        %v1724 = vpop.f32.mrb[0].mxu0
        %v1725 = vadd.f32 %v1620, %v1724
        %v1726 = vpop.f32.mrb[0].mxu0
        %1727 = vmatprep.mubr.f32.mxu0 %v1167
        %1728 = vmatmul.mubr.f32.gmra.mrb[0].mxu0 %v1160
        %v1729 = vpop.f32.mrb[0].mxu0
        %v1730 = vadd.f32 %v1625, %v1729
        %v1731 = vpop.f32.mrb[0].mxu0
        %1732 = vmatprep.mubr.f32.mxu0 %v1168
        %1733 = vmatmul.mubr.f32.gmra.mrb[0].mxu0 %v1161
        %v1734 = vpop.f32.mrb[0].mxu0
        %v1735 = vadd.f32 %v1630, %v1734
        %v1736 = vpop.f32.mrb[0].mxu0
        %1737 = vmatprep.mubr.f32.mxu0 %v1169
        %1738 = vmatmul.mubr.f32.gmra.mrb[0].mxu0 %v1162
        %v1739 = vpop.f32.mrb[0].mxu0
        %v1740 = vadd.f32 %v1635, %v1739
        %v1741 = vpop.f32.mrb[0].mxu0
        %1742 = vmatprep.mubr.f32.mxu0 %v1186
        %1743 = vmatmul.mubr.f32.gmra.mrb[0].mxu0 %v1185
        %v1744 = vpop.f32.mrb[0].mxu0
        %v1745 = vadd.f32 %v1640, %v1744
        %v1746 = vpop.f32.mrb[0].mxu0
        %1747 = vmatprep.mubr.f32.mxu0 0.0
        %1748 = vmatmul.mubr.f32.gmra.mrb[0].mxu0 0.0
        %v1749 = vpop.f32.mrb[0].mxu0
        %v1750 = vadd.f32 %v1645, %v1749
        %v1751 = vpop.f32.mrb[0].mxu0
        %1752 = vdwg.mxu0
        %1753 = vmatprep.subr.mxu0 0.0
        %1754 = vmatpush1.msra.mxu0 %v1317
        %1755 = vmatprep.subr.mxu0 0.0
        %1756 = vmatpush1.msra.mxu0 %v1318
        %1757 = vmatprep.subr.mxu0 0.0
        %1758 = vmatpush1.msra.mxu0 %v1319
        %1759 = vmatprep.subr.mxu0 0.0
        %1760 = vmatpush1.msra.mxu0 %v1320
        %1761 = vmatprep.subr.mxu0 0.0
        %1762 = vmatpush1.msra.mxu0 %v1321
        %1763 = vmatprep.subr.mxu0 0.0
        %1764 = vmatpush1.msra.mxu0 %v1322
        %1765 = vmatprep.subr.mxu0 0.0
        %1766 = vmatpush1.msra.mxu0 %v1323
        %1767 = vmatprep.subr.mxu0 0.0
        %1768 = vmatpush1.msra.mxu0 %v1324
        %1769 = vmatprep.subr.mxu0 0.0
        %1770 = vmatpush1.msra.mxu0 %v1325
        %1771 = vmatprep.subr.mxu0 0.0
        %1772 = vmatpush1.msra.mxu0 %v1326
        %1773 = vmatprep.subr.mxu0 0.0
        %1774 = vmatpush1.msra.mxu0 %v1327
        %1775 = vmatprep.subr.mxu0 0.0
        %1776 = vmatpush1.msra.mxu0 %v1328
        %1777 = vmatprep.subr.mxu0 0.0
        %1778 = vmatpush1.msra.mxu0 %v1329
        %1779 = vmatprep.subr.mxu0 0.0
        %1780 = vmatpush1.msra.mxu0 %v1330
        %1781 = vmatprep.subr.mxu0 0.0
        %1782 = vmatpush1.msra.mxu0 %v1331
        %1783 = vmatprep.subr.mxu0 0.0
        %1784 = vmatpush1.msra.mxu0 %v1332
        %1785 = vmatprep.subr.mxu0 0.0
        %1786 = vmatpush1.msra.mxu0 0.0
        %1787 = vmatprep.subr.mxu0 0.0
        %1788 = vmatpush1.msra.mxu0 0.0
        %1789 = vmatprep.subr.mxu0 0.0
        %1790 = vmatpush1.msra.mxu0 0.0
        %1791 = vmatprep.subr.mxu0 0.0
        %1792 = vmatpush1.msra.mxu0 0.0
        %1793 = vmatprep.subr.mxu0 0.0
        %1794 = vmatpush1.msra.mxu0 0.0
        %1795 = vmatprep.subr.mxu0 0.0
        %1796 = vmatpush1.msra.mxu0 0.0
        %1797 = vmatprep.subr.mxu0 0.0
        %1798 = vmatpush1.msra.mxu0 0.0
        %1799 = vmatprep.subr.mxu0 0.0
        %1800 = vmatpush1.msra.mxu0 0.0
        %1801 = vmatprep.subr.mxu0 0.0
        %1802 = vmatpush1.msra.mxu0 0.0
        %1803 = vmatprep.subr.mxu0 0.0
        %1804 = vmatpush1.msra.mxu0 0.0
        %1805 = vmatprep.subr.mxu0 0.0
        %1806 = vmatpush1.msra.mxu0 0.0
        %1807 = vmatprep.subr.mxu0 0.0
        %1808 = vmatpush1.msra.mxu0 0.0
        %1809 = vmatprep.subr.mxu0 0.0
        %1810 = vmatpush1.msra.mxu0 0.0
        %1811 = vmatprep.subr.mxu0 0.0
        %1812 = vmatpush1.msra.mxu0 0.0
        %1813 = vmatprep.subr.mxu0 0.0
        %1814 = vmatpush1.msra.mxu0 0.0
        %1815 = vmatprep.subr.mxu0 0.0
        %1816 = vmatpush1.msra.mxu0 0.0
        %1817 = vmatprep.mubr.f32.mxu0 0.0
        %1818 = vmatmul.mubr.f32.gmra.mrb[0].mxu0 %v1178
        %v1819 = vpop.f32.mrb[0].mxu0
        %v1820 = vadd.f32 %v1715, %v1819
        %v1821 = vpop.f32.mrb[0].mxu0
        %1822 = vmatprep.mubr.f32.mxu0 0.0
        %1823 = vmatmul.mubr.f32.gmra.mrb[0].mxu0 %v1179
        %v1824 = vpop.f32.mrb[0].mxu0
        %v1825 = vadd.f32 %v1720, %v1824
        %v1826 = vpop.f32.mrb[0].mxu0
        %1827 = vmatprep.mubr.f32.mxu0 0.0
        %1828 = vmatmul.mubr.f32.gmra.mrb[0].mxu0 %v1180
        %v1829 = vpop.f32.mrb[0].mxu0
        %v1830 = vadd.f32 %v1725, %v1829
        %v1831 = vpop.f32.mrb[0].mxu0
        %1832 = vmatprep.mubr.f32.mxu0 0.0
        %1833 = vmatmul.mubr.f32.gmra.mrb[0].mxu0 %v1181
        %v1834 = vpop.f32.mrb[0].mxu0
        %v1835 = vadd.f32 %v1730, %v1834
        %v1836 = vpop.f32.mrb[0].mxu0
        %1837 = vmatprep.mubr.f32.mxu0 0.0
        %1838 = vmatmul.mubr.f32.gmra.mrb[0].mxu0 %v1182
        %v1839 = vpop.f32.mrb[0].mxu0
        %v1840 = vadd.f32 %v1735, %v1839
        %v1841 = vpop.f32.mrb[0].mxu0
        %1842 = vmatprep.mubr.f32.mxu0 0.0
        %1843 = vmatmul.mubr.f32.gmra.mrb[0].mxu0 %v1183
        %v1844 = vpop.f32.mrb[0].mxu0
        %v1845 = vadd.f32 %v1740, %v1844
        %v1846 = vpop.f32.mrb[0].mxu0
        %1847 = vmatprep.mubr.f32.mxu0 0.0
        %1848 = vmatmul.mubr.f32.gmra.mrb[0].mxu0 %v1188
        %v1849 = vpop.f32.mrb[0].mxu0
        %v1850 = vadd.f32 %v1745, %v1849
        %v1851 = vpop.f32.mrb[0].mxu0
        %1852 = vmatprep.mubr.f32.mxu0 0.0
        %1853 = vmatmul.mubr.f32.gmra.mrb[0].mxu0 0.0
        %v1854 = vpop.f32.mrb[0].mxu0
        %v1855 = vadd.f32 %v1750, %v1854
        %v1856 = vpop.f32.mrb[0].mxu0
        %1857 = vdwg.mxu0
        %v1858 = vld [vmem:[%s5] sm:$0x1]
        %v1860 = vlaneseq
        %v1861 = vshrl.u32 %v1860, 7
        %v1862 = vsub.s32 0, %v1861
        %v1863 = vrot.slane %v1858, %v1862
        %v1865 = vmul.f32 %v1820, %v1863
        %v1866 = vmul.f32 %v1825, %v1863
        %v1867 = vmul.f32 %v1830, %v1863
        %v1868 = vmul.f32 %v1835, %v1863
        %v1869 = vmul.f32 %v1840, %v1863
        %v1870 = vmul.f32 %v1845, %v1863
        %v1871 = vmul.f32 %v1850, %v1863
        %v1872 = vmul.f32 %v1855, %v1863
        %v1873 = vld [vmem:[%s6] sm:$0x1]
        %v1875 = vlaneseq
        %v1876 = vshrl.u32 %v1875, 7
        %v1877 = vsub.s32 0, %v1876
        %v1878 = vrot.slane %v1873, %v1877
        %v1880 = vadd.f32 %v1865, %v1878
        %v1881 = vadd.f32 %v1866, %v1878
        %v1882 = vadd.f32 %v1867, %v1878
        %v1883 = vadd.f32 %v1868, %v1878
        %v1884 = vadd.f32 %v1869, %v1878
        %v1885 = vadd.f32 %v1870, %v1878
        %v1886 = vadd.f32 %v1871, %v1878
        %v1887 = vadd.f32 %v1872, %v1878
        %v1888 = vmax.f32 %v1880, 0.0
        %v1889 = vmax.f32 %v1881, 0.0
        %v1890 = vmax.f32 %v1882, 0.0
        %v1891 = vmax.f32 %v1883, 0.0
        %v1892 = vmax.f32 %v1884, 0.0
        %v1893 = vmax.f32 %v1885, 0.0
        %v1894 = vmax.f32 %v1886, 0.0
        %v1895 = vmax.f32 %v1887, 0.0
        %1896 = vst [vmem:[%s325] sm:$0xff] %v1888
        %1897 = vst [vmem:[%s325 + $0x8] sm:$0xff] %v1889
        %1898 = vst [vmem:[%s325 + $0x10] sm:$0xff] %v1890
        %1899 = vst [vmem:[%s325 + $0x18] sm:$0xff] %v1891
        %1900 = vst [vmem:[%s325 + $0x20] sm:$0xff] %v1892
        %1901 = vst [vmem:[%s325 + $0x28] sm:$0xff] %v1893
        %1902 = vst [vmem:[%s325 + $0x30] sm:$0xff] %v1894
        %1903 = vst [vmem:[%s325 + $0x38] sm:$0xff] %v1895
        %s1904 = sand.u32 %s185, 1
        %s1905 = scalar_lea.sflag [#allocation6], %s1904
        %s1906 = sand.u32 %s185, 1
        %s1907 = smul.addr %s1906, 64
        %s1908 = scalar_lea.vmem [#allocation10], %s1907
        // Predicated region
        $region61: #{tpu_custom_call.1} parent=47 // pred_check
          %p1909 = pneg %p195
        $region62: #{tpu_custom_call.1} parent=47 // pred_check_branch
          %1911 = sbr.rel (%p1909) target = $region64
        $region63: #{tpu_custom_call.1} parent=47 // pred_region
          %s1913 = ssub.s32 1024, 1024
          %1914 = vsyncadd %s1905, %s1913
          %s1915 = smul.addr %s25, 8
          %s1916 = smul.addr %s1915, 128
          %s1917 = scalar_lea.hbm %s7, %s1916
          %s1918 = sshll.u32 %s1908, 4
          %s1919 = int_to_ptr.vmem [resolvable:$true] %s1918
          %1924 = dma.vmem_to_hbm [thread:$0]  %s1919, 1024, %s1917, %s1905, 128, 128, 8
        $region64: #{tpu_custom_call.1} parent=47 // pred_fallthru
          _
      $region48: #{tpu_custom_call.1} parent=5 // pred_fallthru
        _
      %p1925 = scmp.le.s32.totalorder 2, %s20
      // Predicated region
      $region65: #{tpu_custom_call.1} parent=5 // pred_check
        %p1926 = pneg %p1925
      $region66: #{tpu_custom_call.1} parent=5 // pred_check_branch
        %1928 = sbr.rel (%p1926) target = $region68
      $region67: #{tpu_custom_call.1} parent=5 // pred_region
        %s1929 = ssub.s32 %s20, 2
        // Predicated region
        $region69: #{tpu_custom_call.1} parent=67 // pred_check
          %p1930 = pneg %p201
        $region70: #{tpu_custom_call.1} parent=67 // pred_check_branch
          %1932 = sbr.rel (%p1930) target = $region72
        $region71: #{tpu_custom_call.1} parent=67 // pred_region
          %s1933 = sand.u32 %s186, 1
          %s1934 = scalar_lea.sflag [#allocation6], %s1933
          %s1935 = sand.u32 %s186, 1
          %s1936 = smul.addr %s1935, 64
          %s1937 = scalar_lea.vmem [#allocation10], %s1936
          %1938 = dma.done %s1934, 1024
        $region72: #{tpu_custom_call.1} parent=67 // pred_fallthru
          _
      $region68: #{tpu_custom_call.1} parent=5 // pred_fallthru
        _
    $region6: #{tpu_custom_call.1} parent=1 // loop_footer
      %s24 = sadd.s32 1, %s20
    $region7: #{tpu_custom_call.1} parent=1 // loop_footer_branch
      %19 = sbr.rel target = $region3
    $region8: #{tpu_custom_call.1} parent=1 // loop_exit
      _
    %1939 = vsyncpa [#allocation5], 1
    %s1940 = scalar_lea.sflag [#allocation5], 1
    %1941 = vsyncpa %s1940, 1
    %1942 = vsyncpa [#allocation8], 1
    %1943 = vsyncpa [#allocation6], 1
    %s1944 = scalar_lea.sflag [#allocation6], 1
    %1945 = vsyncpa %s1944, 1

</llo_original>
